<compile_context>
chip_gen: v6e
topology: v6e:2x2x1
jax: 0.10.0
libtpu: 0.0.40
codegen_flags: <defaults>
</compile_context>

<pallas_src>
import functools

import jax
import jax.numpy as jnp
from jax import lax
from jax.experimental import pallas as pl
from jax.experimental.pallas import tpu as pltpu


def _se_gate_kernel(fold, cin, hw, s_ref, wr_ref, br_ref, x_ref, o_ref):
    f32 = jnp.float32
    m = fold * cin

    # ---- 1x1-conv gate, computed directly in [rows_tile, fold] layout ----
    # Block-diagonal S (built in-kernel; no integer division, no reshapes):
    #   S[c*cin + k, c'] = s[k] if c == c' else 0
    # so that (weight viewed as [rows, fold*cin]) @ S == conv pre-activation [rows, fold].
    s_rep = jnp.concatenate([s_ref[...].astype(f32)] * fold, axis=0)        # [fold*cin, 1]
    row_i = lax.broadcasted_iota(jnp.int32, (m, fold), 0)
    col_i = lax.broadcasted_iota(jnp.int32, (m, fold), 1)
    lo = col_i * cin
    s_blk = jnp.where((row_i >= lo) & (row_i < lo + cin), s_rep, 0.0)       # [fold*cin, fold]

    pre = jnp.dot(wr_ref[...].astype(f32), s_blk,
                  preferred_element_type=f32)                               # [rows_t, fold]
    gate = jax.nn.sigmoid(pre + br_ref[...].astype(f32))                    # [rows_t, fold]

    # ---- expand each per-channel gate over its hw spatial lanes (idle MXU) ----
    # One-hot expansion E[c, l] = 1 iff c*hw <= l < (c+1)*hw   (tiny, built in-kernel).
    lane_i = lax.broadcasted_iota(jnp.int32, (fold, fold * hw), 1)
    chan_i = lax.broadcasted_iota(jnp.int32, (fold, fold * hw), 0)
    clo = chan_i * hw
    expand = ((lane_i >= clo) & (lane_i < clo + hw)).astype(f32)            # [fold, fold*hw]
    gate_wide = jnp.dot(gate, expand, preferred_element_type=f32)           # [rows_t, fold*hw]

    o_ref[...] = (x_ref[...].astype(f32) * gate_wide).astype(o_ref.dtype)


def se_conv_sigmoid_mul(x500, x497, weight, bias, *, param_dtype=jnp.bfloat16):
    """x500: [1, Cin, 1, 1], x497: [1, Cout, H, W], weight: [Cout, Cin, 1, 1], bias: [Cout]."""
    n, cin, hs, ws = x500.shape
    nb, cout, h, w = x497.shape
    assert n == 1 and nb == 1 and hs == 1 and ws == 1
    hw = h * w

    # Fold 16 channels per row so the feature map is lane-dense (free contiguous view).
    fold = 16 if cout % 16 == 0 else 1
    rows = cout // fold

    # Reshape-only views (no data movement); one tiny dtype cast for the conv weight.
    s = x500.reshape(cin, 1)                                    # [Cin, 1]   (activation, f32)
    wr = weight.reshape(rows, fold * cin).astype(param_dtype)   # [rows, fold*Cin]  bf16
    br = bias.reshape(rows, fold)                               # [rows, fold]
    xr = x497.reshape(rows, fold * hw)                          # [rows, fold*H*W]  lane-dense

    # Grid: 1 step on single-TC chips (v5e/v6e); even 2-way split across v7x's two TCs.
    num_tiles = 1
    try:
        kind = jax.devices()[0].device_kind.lower()
    except Exception:
        kind = ""
    if "v7" in kind and rows % 16 == 0:
        num_tiles = 2
    rows_t = rows // num_tiles

    x_bytes = jnp.dtype(x497.dtype).itemsize
    cost = pl.CostEstimate(
        flops=2 * cout * cin + 2 * rows * fold * (fold * hw) + cout * hw,
        transcendentals=cout,
        bytes_accessed=(2 * cout * hw * x_bytes
                        + cout * cin * jnp.dtype(param_dtype).itemsize
                        + cout * jnp.dtype(bias.dtype).itemsize
                        + cin * jnp.dtype(x500.dtype).itemsize),
    )

    kernel = functools.partial(_se_gate_kernel, fold, cin, hw)

    out = pl.pallas_call(
        kernel,
        out_shape=jax.ShapeDtypeStruct((rows, fold * hw), x497.dtype),
        grid=(num_tiles,),
        in_specs=[
            pl.BlockSpec((cin, 1), lambda j: (0, 0)),               # squeeze vector (tiny, whole)
            pl.BlockSpec((rows_t, fold * cin), lambda j: (j, 0)),   # weight row-tile (bf16)
            pl.BlockSpec((rows_t, fold), lambda j: (j, 0)),         # bias row-tile
            pl.BlockSpec((rows_t, fold * hw), lambda j: (j, 0)),    # feature-map row-tile
        ],
        out_specs=pl.BlockSpec((rows_t, fold * hw), lambda j: (j, 0)),
        compiler_params=pltpu.CompilerParams(
            dimension_semantics=("parallel",),
        ),
        cost_estimate=cost,
    )(s, wr, br, xr)

    return out.reshape(1, cout, h, w)    # free reshape back to NCHW


def reference(x500, x497, weight, bias):
    # pure-JAX f32 reference of the PyTorch forward
    cin = x500.shape[1]
    cout = weight.shape[0]
    s = x500.reshape(1, cin)
    gate = jax.nn.sigmoid(s @ weight.reshape(cout, cin).T + bias)
    return gate.reshape(1, cout, 1, 1) * x497


if __name__ == "__main__":
    key = jax.random.PRNGKey(0)
    k1, k2, k3, k4 = jax.random.split(key, 4)

    Cin, Cout, H, W = 64, 1536, 7, 7
    x500 = jax.random.normal(k1, (1, Cin, 1, 1), dtype=jnp.float32)
    x497 = jax.random.normal(k2, (1, Cout, H, W), dtype=jnp.float32)
    # deterministic synthetic conv parameters (shapes match Conv2d(64, 1536, 1))
    weight = jax.random.normal(k3, (Cout, Cin, 1, 1), dtype=jnp.float32) * 0.05
    bias = jax.random.normal(k4, (Cout,), dtype=jnp.float32) * 0.05

    out = jax.block_until_ready(se_conv_sigmoid_mul(x500, x497, weight, bias))
    ref = reference(x500, x497, weight, bias)

    assert out.shape == (1, Cout, H, W)
    # bf16 conv weights in the kernel vs f32 reference -> loose-but-safe tolerance
    assert jnp.allclose(out, ref, atol=1e-2, rtol=1e-2)

    print("KERNEL_OK")
</pallas_src>

<mosaic_0001>
module attributes {stable_mosaic.version = 11 : i64} {
  func.func @_se_gate_kernel(%arg0: i32, %arg1: memref<64x1xf32, #tpu.memory_space<vmem>>, %arg2: memref<96x1024xbf16, #tpu.memory_space<vmem>>, %arg3: memref<96x16xf32, #tpu.memory_space<vmem>>, %arg4: memref<96x784xf32, #tpu.memory_space<vmem>>, %arg5: memref<96x784xf32, #tpu.memory_space<vmem>>) attributes {dimension_semantics = [#tpu.dimension_semantics<parallel>], iteration_bounds = array<i64: 1>, scalar_prefetch = 0 : i64, scratch_operands = 0 : i64, tpu.core_type = #tpu.core_type<tc>, window_params = [{pipeline_mode = #tpu.pipeline_mode<synchronous>, transform_indices = @transform_0, window_bounds = array<i64: 64, 1>}, {transform_indices = @transform_1, window_bounds = array<i64: 96, 1024>}, {transform_indices = @transform_2, window_bounds = array<i64: 96, 16>}, {transform_indices = @transform_3, window_bounds = array<i64: 96, 784>}, {transform_indices = @transform_4, window_bounds = array<i64: 96, 784>}]} {
    %c0 = arith.constant 0 : index
    %c0_0 = arith.constant 0 : index
    %0 = vector.load %arg1[%c0, %c0_0] : memref<64x1xf32, #tpu.memory_space<vmem>>, vector<64x1xf32>
    %1 = tpu.concatenate %0, %0, %0, %0, %0, %0, %0, %0, %0, %0, %0, %0, %0, %0, %0, %0 in 0 : vector<64x1xf32>, vector<64x1xf32>, vector<64x1xf32>, vector<64x1xf32>, vector<64x1xf32>, vector<64x1xf32>, vector<64x1xf32>, vector<64x1xf32>, vector<64x1xf32>, vector<64x1xf32>, vector<64x1xf32>, vector<64x1xf32>, vector<64x1xf32>, vector<64x1xf32>, vector<64x1xf32>, vector<64x1xf32> -> vector<1024x1xf32>
    %2 = tpu.iota {dimensions = array<i32: 0>} : vector<1024x16xi32>
    %3 = tpu.iota {dimensions = array<i32: 1>} : vector<1024x16xi32>
    %c64_i32 = arith.constant 64 : i32
    %4 = vector.broadcast %c64_i32 : i32 to vector<1024x16xi32>
    %5 = arith.muli %3, %4 : vector<1024x16xi32>
    %6 = arith.cmpi sge, %2, %5 : vector<1024x16xi32>
    %c64_i32_1 = arith.constant 64 : i32
    %7 = vector.broadcast %c64_i32_1 : i32 to vector<1024x16xi32>
    %8 = arith.addi %5, %7 : vector<1024x16xi32>
    %9 = arith.cmpi slt, %2, %8 : vector<1024x16xi32>
    %10 = arith.andi %6, %9 : vector<1024x16xi1>
    %cst = arith.constant 0.000000e+00 : f32
    %11 = vector.shape_cast %1 : vector<1024x1xf32> to vector<1024x1xf32>
    %12 = vector.broadcast %11 : vector<1024x1xf32> to vector<1024x16xf32>
    %13 = vector.broadcast %cst : f32 to vector<1024x16xf32>
    %14 = arith.select %10, %12, %13 : vector<1024x16xi1>, vector<1024x16xf32>
    %c0_2 = arith.constant 0 : index
    %c0_3 = arith.constant 0 : index
    %15 = vector.load %arg2[%c0_2, %c0_3] : memref<96x1024xbf16, #tpu.memory_space<vmem>>, vector<96x1024xbf16>
    %16 = arith.extf %15 : vector<96x1024xbf16> to vector<96x1024xf32>
    %cst_4 = arith.constant dense<0.000000e+00> : vector<96x16xf32>
    %17 = tpu.matmul %16, %14, %cst_4 {dimension_numbers = #tpu.dot_dimension_numbers<[1], [0], [0], [1], [0, 0, 1, 1], [], []>} : vector<96x1024xf32>, vector<1024x16xf32>, vector<96x16xf32> -> vector<96x16xf32>
    %c0_5 = arith.constant 0 : index
    %c0_6 = arith.constant 0 : index
    %18 = vector.load %arg3[%c0_5, %c0_6] : memref<96x16xf32, #tpu.memory_space<vmem>>, vector<96x16xf32>
    %19 = arith.addf %17, %18 : vector<96x16xf32>
    %20 = arith.negf %19 : vector<96x16xf32>
    %21 = math.exp %20 : vector<96x16xf32>
    %cst_7 = arith.constant 1.000000e+00 : f32
    %22 = vector.broadcast %cst_7 : f32 to vector<96x16xf32>
    %23 = arith.addf %22, %21 : vector<96x16xf32>
    %24 = arith.divf %22, %23 : vector<96x16xf32>
    %25 = tpu.iota {dimensions = array<i32: 1>} : vector<16x784xi32>
    %26 = tpu.iota {dimensions = array<i32: 0>} : vector<16x784xi32>
    %c49_i32 = arith.constant 49 : i32
    %27 = vector.broadcast %c49_i32 : i32 to vector<16x784xi32>
    %28 = arith.muli %26, %27 : vector<16x784xi32>
    %29 = arith.cmpi sge, %25, %28 : vector<16x784xi32>
    %c49_i32_8 = arith.constant 49 : i32
    %30 = vector.broadcast %c49_i32_8 : i32 to vector<16x784xi32>
    %31 = arith.addi %28, %30 : vector<16x784xi32>
    %32 = arith.cmpi slt, %25, %31 : vector<16x784xi32>
    %33 = arith.andi %29, %32 : vector<16x784xi1>
    %34 = arith.extui %33 : vector<16x784xi1> to vector<16x784xi32>
    %35 = arith.sitofp %34 : vector<16x784xi32> to vector<16x784xf32>
    %cst_9 = arith.constant dense<0.000000e+00> : vector<96x784xf32>
    %36 = tpu.matmul %24, %35, %cst_9 {dimension_numbers = #tpu.dot_dimension_numbers<[1], [0], [0], [1], [0, 0, 1, 1], [], []>} : vector<96x16xf32>, vector<16x784xf32>, vector<96x784xf32> -> vector<96x784xf32>
    %c0_10 = arith.constant 0 : index
    %c0_11 = arith.constant 0 : index
    %37 = vector.load %arg4[%c0_10, %c0_11] : memref<96x784xf32, #tpu.memory_space<vmem>>, vector<96x784xf32>
    %38 = arith.mulf %37, %36 : vector<96x784xf32>
    %c0_12 = arith.constant 0 : index
    %c0_13 = arith.constant 0 : index
    %39 = vector.load %arg5[%c0_12, %c0_13] : memref<96x784xf32, #tpu.memory_space<vmem>>, vector<96x784xf32>
    tpu.vector_store %arg5[%c0_12, %c0_13], %38 {strides = array<i32>} : memref<96x784xf32, #tpu.memory_space<vmem>>, vector<96x784xf32>,
    return
  }
  func.func @transform_0(%arg0: i32) -> (i32, i32) {
    %c0_i32 = arith.constant 0 : i32
    %c0_i32_0 = arith.constant 0 : i32
    %c0_i32_1 = arith.constant 0 : i32
    return %c0_i32, %c0_i32_0 : i32, i32
  }
  func.func @transform_1(%arg0: i32) -> (i32, i32) {
    %c0_i32 = arith.constant 0 : i32
    %c0_i32_0 = arith.constant 0 : i32
    return %arg0, %c0_i32 : i32, i32
  }
  func.func @transform_2(%arg0: i32) -> (i32, i32) {
    %c0_i32 = arith.constant 0 : i32
    %c0_i32_0 = arith.constant 0 : i32
    return %arg0, %c0_i32 : i32, i32
  }
  func.func @transform_3(%arg0: i32) -> (i32, i32) {
    %c0_i32 = arith.constant 0 : i32
    %c0_i32_0 = arith.constant 0 : i32
    return %arg0, %c0_i32 : i32, i32
  }
  func.func @transform_4(%arg0: i32) -> (i32, i32) {
    %c0_i32 = arith.constant 0 : i32
    %c0_i32_0 = arith.constant 0 : i32
    return %arg0, %c0_i32 : i32, i32
  }
}

</mosaic_0001>

<llo_original>
// kernel: tpu_custom_call.1
$region0: #{tpu_custom_call.1}
  #allocation0 [shape = 'u32[]', space=smem, size = 0x4, offset = 0x4, fixed_abs, tag = 'smem constant byte address 0x4 - core index']
  #allocation1 [shape = 'u32[144,128]{1,0:T(1,128)}', space=vmem, size = 0x12000, scoped, tag = 'internal scratch']
  %s0 = inlined_call_operand.vmem [shape: f32[64,1], index: 0, kind: input, shape index: {}]
  %s1 = inlined_call_operand.hbm [shape: bf16[96,1024], index: 1, kind: input, shape index: {}]
  %s2 = inlined_call_operand.vmem [shape: f32[96,16], index: 2, kind: input, shape index: {}]
  %s3 = inlined_call_operand.hbm [shape: f32[96,784], index: 3, kind: input, shape index: {}]
  %s4 = inlined_call_operand.hbm [shape: f32[96,784], index: 4, kind: output, shape index: {}]
  %s5 = sld [smem:[#allocation0]]
  $region34: #{tpu_custom_call.1} parent=0
    _
  %s7 = ssub.s32 1, %s5
  %s8 = scalar_select 0, %s7, %s5
  $region1: #{tpu_custom_call.1} parent=0
    #allocation2 [shape = 'u8[196608]{0}', space=vmem, size = 0x30000, scoped, tag = 'input window, operand 1, single buffered']
    #allocation3 [shape = 's32[1]{0}', space=sflag, size = 0x4, scoped, tag = 'scoped memory for tpu_custom_call.1']
    #allocation4 [shape = 's32[1]{0}', space=sflag, size = 0x4, scoped, tag = 'scoped memory for tpu_custom_call.1']
    #allocation5 [shape = 'u8[344064]{0}', space=vmem, size = 0x54000, scoped, tag = 'input window, operand 3, single buffered']
    #allocation6 [shape = 's32[1]{0}', space=sflag, size = 0x4, scoped, tag = 'scoped memory for tpu_custom_call.1']
    #allocation7 [shape = 'u8[344064]{0}', space=vmem, size = 0x54000, scoped, tag = 'output window, operand 0, single buffered']
    %9 = vsyncpa [#allocation3], 0
    %10 = vsyncpa [#allocation6], 0
    %11 = vsyncpa [#allocation4], 0
    // Predicated region
    $region2: #{tpu_custom_call.1} parent=1 // pred_check
      _
    $region3: #{tpu_custom_call.1} parent=1 // pred_check_branch
      %13 = sbr.rel (0) target = $region5
    $region4: #{tpu_custom_call.1} parent=1 // pred_region
      _
    $region5: #{tpu_custom_call.1} parent=1 // pred_fallthru
      _
    // Predicated region
    $region6: #{tpu_custom_call.1} parent=1 // pred_check
      _
    $region7: #{tpu_custom_call.1} parent=1 // pred_check_branch
      %15 = sbr.rel (0) target = $region9
    $region8: #{tpu_custom_call.1} parent=1 // pred_region
      %s17 = ssub.s32 6144, 6144
      %18 = vsyncadd [#allocation3], %s17
      %s19 = sshll.u32 [#allocation2], 4
      %s20 = int_to_ptr.vmem [resolvable:$true] %s19
      %25 = dma.hbm_to_vmem [thread:$0]  %s1, 6144, %s20, [#allocation3], 512, 512, 32
    $region9: #{tpu_custom_call.1} parent=1 // pred_fallthru
      _
    // Predicated region
    $region10: #{tpu_custom_call.1} parent=1 // pred_check
      _
    $region11: #{tpu_custom_call.1} parent=1 // pred_check_branch
      %27 = sbr.rel (0) target = $region13
    $region12: #{tpu_custom_call.1} parent=1 // pred_region
      _
    $region13: #{tpu_custom_call.1} parent=1 // pred_fallthru
      _
    // Predicated region
    $region14: #{tpu_custom_call.1} parent=1 // pred_check
      _
    $region15: #{tpu_custom_call.1} parent=1 // pred_check_branch
      %29 = sbr.rel (0) target = $region17
    $region16: #{tpu_custom_call.1} parent=1 // pred_region
      %s31 = ssub.s32 10752, 10752
      %32 = vsyncadd [#allocation6], %s31
      %s33 = sshll.u32 [#allocation5], 4
      %s34 = int_to_ptr.vmem [resolvable:$true] %s33
      %39 = dma.hbm_to_vmem [thread:$0]  %s3, 10752, %s34, [#allocation6], 896, 896, 56
    $region17: #{tpu_custom_call.1} parent=1 // pred_fallthru
      _
    // Predicated region
    $region18: #{tpu_custom_call.1} parent=1 // pred_check
      _
    $region19: #{tpu_custom_call.1} parent=1 // pred_check_branch
      %41 = sbr.rel (0) target = $region21
    $region20: #{tpu_custom_call.1} parent=1 // pred_region
      %42 = dma.done [#allocation3], 6144
    $region21: #{tpu_custom_call.1} parent=1 // pred_fallthru
      _
    // Predicated region
    $region22: #{tpu_custom_call.1} parent=1 // pred_check
      _
    $region23: #{tpu_custom_call.1} parent=1 // pred_check_branch
      %44 = sbr.rel (0) target = $region25
    $region24: #{tpu_custom_call.1} parent=1 // pred_region
      %45 = dma.done [#allocation6], 10752
    $region25: #{tpu_custom_call.1} parent=1 // pred_fallthru
      _
    %v46 = vld [vmem:[%s0] sm:$0xff]
    %v47 = vld [vmem:[%s0 + $0x8] sm:$0xff]
    %v48 = vld [vmem:[%s0 + $0x10] sm:$0xff]
    %v49 = vld [vmem:[%s0 + $0x18] sm:$0xff]
    %v50 = vld [vmem:[%s0 + $0x20] sm:$0xff]
    %v51 = vld [vmem:[%s0 + $0x28] sm:$0xff]
    %v52 = vld [vmem:[%s0 + $0x30] sm:$0xff]
    %v53 = vld [vmem:[%s0 + $0x38] sm:$0xff]
    %v54 = vlaneseq
    %v55 = vshrl.u32 %v54, 7
    %v56 = vadd.s32 %v55, 8
    %v57 = vadd.s32 %v55, 16
    %v58 = vadd.s32 %v55, 24
    %v59 = vadd.s32 %v55, 32
    %v60 = vadd.s32 %v55, 40
    %v61 = vadd.s32 %v55, 48
    %v62 = vadd.s32 %v55, 56
    %v63 = vadd.s32 %v55, 64
    %v64 = vadd.s32 %v55, 72
    %v65 = vadd.s32 %v55, 80
    %v66 = vadd.s32 %v55, 88
    %v67 = vadd.s32 %v55, 96
    %v68 = vadd.s32 %v55, 104
    %v69 = vadd.s32 %v55, 112
    %v70 = vadd.s32 %v55, 120
    %v71 = vadd.s32 %v55, 128
    %v72 = vadd.s32 %v55, 136
    %v73 = vadd.s32 %v55, 144
    %v74 = vadd.s32 %v55, 152
    %v75 = vadd.s32 %v55, 160
    %v76 = vadd.s32 %v55, 168
    %v77 = vadd.s32 %v55, 176
    %v78 = vadd.s32 %v55, 184
    %v79 = vadd.s32 %v55, 192
    %v80 = vadd.s32 %v55, 200
    %v81 = vadd.s32 %v55, 208
    %v82 = vadd.s32 %v55, 216
    %v83 = vadd.s32 %v55, 224
    %v84 = vadd.s32 %v55, 232
    %v85 = vadd.s32 %v55, 240
    %v86 = vadd.s32 %v55, 248
    %v87 = vadd.s32 %v55, 256
    %v88 = vadd.s32 %v55, 264
    %v89 = vadd.s32 %v55, 272
    %v90 = vadd.s32 %v55, 280
    %v91 = vadd.s32 %v55, 288
    %v92 = vadd.s32 %v55, 296
    %v93 = vadd.s32 %v55, 304
    %v94 = vadd.s32 %v55, 312
    %v95 = vadd.s32 %v55, 320
    %v96 = vadd.s32 %v55, 328
    %v97 = vadd.s32 %v55, 336
    %v98 = vadd.s32 %v55, 344
    %v99 = vadd.s32 %v55, 352
    %v100 = vadd.s32 %v55, 360
    %v101 = vadd.s32 %v55, 368
    %v102 = vadd.s32 %v55, 376
    %v103 = vadd.s32 %v55, 384
    %v104 = vadd.s32 %v55, 392
    %v105 = vadd.s32 %v55, 400
    %v106 = vadd.s32 %v55, 408
    %v107 = vadd.s32 %v55, 416
    %v108 = vadd.s32 %v55, 424
    %v109 = vadd.s32 %v55, 432
    %v110 = vadd.s32 %v55, 440
    %v111 = vadd.s32 %v55, 448
    %v112 = vadd.s32 %v55, 456
    %v113 = vadd.s32 %v55, 464
    %v114 = vadd.s32 %v55, 472
    %v115 = vadd.s32 %v55, 480
    %v116 = vadd.s32 %v55, 488
    %v117 = vadd.s32 %v55, 496
    %v118 = vadd.s32 %v55, 504
    %v119 = vadd.s32 %v55, 512
    %v120 = vadd.s32 %v55, 520
    %v121 = vadd.s32 %v55, 528
    %v122 = vadd.s32 %v55, 536
    %v123 = vadd.s32 %v55, 544
    %v124 = vadd.s32 %v55, 552
    %v125 = vadd.s32 %v55, 560
    %v126 = vadd.s32 %v55, 568
    %v127 = vadd.s32 %v55, 576
    %v128 = vadd.s32 %v55, 584
    %v129 = vadd.s32 %v55, 592
    %v130 = vadd.s32 %v55, 600
    %v131 = vadd.s32 %v55, 608
    %v132 = vadd.s32 %v55, 616
    %v133 = vadd.s32 %v55, 624
    %v134 = vadd.s32 %v55, 632
    %v135 = vadd.s32 %v55, 640
    %v136 = vadd.s32 %v55, 648
    %v137 = vadd.s32 %v55, 656
    %v138 = vadd.s32 %v55, 664
    %v139 = vadd.s32 %v55, 672
    %v140 = vadd.s32 %v55, 680
    %v141 = vadd.s32 %v55, 688
    %v142 = vadd.s32 %v55, 696
    %v143 = vadd.s32 %v55, 704
    %v144 = vadd.s32 %v55, 712
    %v145 = vadd.s32 %v55, 720
    %v146 = vadd.s32 %v55, 728
    %v147 = vadd.s32 %v55, 736
    %v148 = vadd.s32 %v55, 744
    %v149 = vadd.s32 %v55, 752
    %v150 = vadd.s32 %v55, 760
    %v151 = vadd.s32 %v55, 768
    %v152 = vadd.s32 %v55, 776
    %v153 = vadd.s32 %v55, 784
    %v154 = vadd.s32 %v55, 792
    %v155 = vadd.s32 %v55, 800
    %v156 = vadd.s32 %v55, 808
    %v157 = vadd.s32 %v55, 816
    %v158 = vadd.s32 %v55, 824
    %v159 = vadd.s32 %v55, 832
    %v160 = vadd.s32 %v55, 840
    %v161 = vadd.s32 %v55, 848
    %v162 = vadd.s32 %v55, 856
    %v163 = vadd.s32 %v55, 864
    %v164 = vadd.s32 %v55, 872
    %v165 = vadd.s32 %v55, 880
    %v166 = vadd.s32 %v55, 888
    %v167 = vadd.s32 %v55, 896
    %v168 = vadd.s32 %v55, 904
    %v169 = vadd.s32 %v55, 912
    %v170 = vadd.s32 %v55, 920
    %v171 = vadd.s32 %v55, 928
    %v172 = vadd.s32 %v55, 936
    %v173 = vadd.s32 %v55, 944
    %v174 = vadd.s32 %v55, 952
    %v175 = vadd.s32 %v55, 960
    %v176 = vadd.s32 %v55, 968
    %v177 = vadd.s32 %v55, 976
    %v178 = vadd.s32 %v55, 984
    %v179 = vadd.s32 %v55, 992
    %v180 = vadd.s32 %v55, 1000
    %v181 = vadd.s32 %v55, 1008
    %v182 = vadd.s32 %v55, 1016
    %v183 = vlaneseq
    %v184 = vand.u32 %v183, 127
    %v185 = vmul.u32 %v184, 64
    %vm186 = vcmp.ge.s32.totalorder %v55, %v185
    %vm187 = vcmp.ge.s32.totalorder %v56, %v185
    %vm188 = vcmp.ge.s32.totalorder %v57, %v185
    %vm189 = vcmp.ge.s32.totalorder %v58, %v185
    %vm190 = vcmp.ge.s32.totalorder %v59, %v185
    %vm191 = vcmp.ge.s32.totalorder %v60, %v185
    %vm192 = vcmp.ge.s32.totalorder %v61, %v185
    %vm193 = vcmp.ge.s32.totalorder %v62, %v185
    %vm194 = vcmp.ge.s32.totalorder %v63, %v185
    %vm195 = vcmp.ge.s32.totalorder %v64, %v185
    %vm196 = vcmp.ge.s32.totalorder %v65, %v185
    %vm197 = vcmp.ge.s32.totalorder %v66, %v185
    %vm198 = vcmp.ge.s32.totalorder %v67, %v185
    %vm199 = vcmp.ge.s32.totalorder %v68, %v185
    %vm200 = vcmp.ge.s32.totalorder %v69, %v185
    %vm201 = vcmp.ge.s32.totalorder %v70, %v185
    %vm202 = vcmp.ge.s32.totalorder %v71, %v185
    %vm203 = vcmp.ge.s32.totalorder %v72, %v185
    %vm204 = vcmp.ge.s32.totalorder %v73, %v185
    %vm205 = vcmp.ge.s32.totalorder %v74, %v185
    %vm206 = vcmp.ge.s32.totalorder %v75, %v185
    %vm207 = vcmp.ge.s32.totalorder %v76, %v185
    %vm208 = vcmp.ge.s32.totalorder %v77, %v185
    %vm209 = vcmp.ge.s32.totalorder %v78, %v185
    %vm210 = vcmp.ge.s32.totalorder %v79, %v185
    %vm211 = vcmp.ge.s32.totalorder %v80, %v185
    %vm212 = vcmp.ge.s32.totalorder %v81, %v185
    %vm213 = vcmp.ge.s32.totalorder %v82, %v185
    %vm214 = vcmp.ge.s32.totalorder %v83, %v185
    %vm215 = vcmp.ge.s32.totalorder %v84, %v185
    %vm216 = vcmp.ge.s32.totalorder %v85, %v185
    %vm217 = vcmp.ge.s32.totalorder %v86, %v185
    %vm218 = vcmp.ge.s32.totalorder %v87, %v185
    %vm219 = vcmp.ge.s32.totalorder %v88, %v185
    %vm220 = vcmp.ge.s32.totalorder %v89, %v185
    %vm221 = vcmp.ge.s32.totalorder %v90, %v185
    %vm222 = vcmp.ge.s32.totalorder %v91, %v185
    %vm223 = vcmp.ge.s32.totalorder %v92, %v185
    %vm224 = vcmp.ge.s32.totalorder %v93, %v185
    %vm225 = vcmp.ge.s32.totalorder %v94, %v185
    %vm226 = vcmp.ge.s32.totalorder %v95, %v185
    %vm227 = vcmp.ge.s32.totalorder %v96, %v185
    %vm228 = vcmp.ge.s32.totalorder %v97, %v185
    %vm229 = vcmp.ge.s32.totalorder %v98, %v185
    %vm230 = vcmp.ge.s32.totalorder %v99, %v185
    %vm231 = vcmp.ge.s32.totalorder %v100, %v185
    %vm232 = vcmp.ge.s32.totalorder %v101, %v185
    %vm233 = vcmp.ge.s32.totalorder %v102, %v185
    %vm234 = vcmp.ge.s32.totalorder %v103, %v185
    %vm235 = vcmp.ge.s32.totalorder %v104, %v185
    %vm236 = vcmp.ge.s32.totalorder %v105, %v185
    %vm237 = vcmp.ge.s32.totalorder %v106, %v185
    %vm238 = vcmp.ge.s32.totalorder %v107, %v185
    %vm239 = vcmp.ge.s32.totalorder %v108, %v185
    %vm240 = vcmp.ge.s32.totalorder %v109, %v185
    %vm241 = vcmp.ge.s32.totalorder %v110, %v185
    %vm242 = vcmp.ge.s32.totalorder %v111, %v185
    %vm243 = vcmp.ge.s32.totalorder %v112, %v185
    %vm244 = vcmp.ge.s32.totalorder %v113, %v185
    %vm245 = vcmp.ge.s32.totalorder %v114, %v185
    %vm246 = vcmp.ge.s32.totalorder %v115, %v185
    %vm247 = vcmp.ge.s32.totalorder %v116, %v185
    %vm248 = vcmp.ge.s32.totalorder %v117, %v185
    %vm249 = vcmp.ge.s32.totalorder %v118, %v185
    %vm250 = vcmp.ge.s32.totalorder %v119, %v185
    %vm251 = vcmp.ge.s32.totalorder %v120, %v185
    %vm252 = vcmp.ge.s32.totalorder %v121, %v185
    %vm253 = vcmp.ge.s32.totalorder %v122, %v185
    %vm254 = vcmp.ge.s32.totalorder %v123, %v185
    %vm255 = vcmp.ge.s32.totalorder %v124, %v185
    %vm256 = vcmp.ge.s32.totalorder %v125, %v185
    %vm257 = vcmp.ge.s32.totalorder %v126, %v185
    %vm258 = vcmp.ge.s32.totalorder %v127, %v185
    %vm259 = vcmp.ge.s32.totalorder %v128, %v185
    %vm260 = vcmp.ge.s32.totalorder %v129, %v185
    %vm261 = vcmp.ge.s32.totalorder %v130, %v185
    %vm262 = vcmp.ge.s32.totalorder %v131, %v185
    %vm263 = vcmp.ge.s32.totalorder %v132, %v185
    %vm264 = vcmp.ge.s32.totalorder %v133, %v185
    %vm265 = vcmp.ge.s32.totalorder %v134, %v185
    %vm266 = vcmp.ge.s32.totalorder %v135, %v185
    %vm267 = vcmp.ge.s32.totalorder %v136, %v185
    %vm268 = vcmp.ge.s32.totalorder %v137, %v185
    %vm269 = vcmp.ge.s32.totalorder %v138, %v185
    %vm270 = vcmp.ge.s32.totalorder %v139, %v185
    %vm271 = vcmp.ge.s32.totalorder %v140, %v185
    %vm272 = vcmp.ge.s32.totalorder %v141, %v185
    %vm273 = vcmp.ge.s32.totalorder %v142, %v185
    %vm274 = vcmp.ge.s32.totalorder %v143, %v185
    %vm275 = vcmp.ge.s32.totalorder %v144, %v185
    %vm276 = vcmp.ge.s32.totalorder %v145, %v185
    %vm277 = vcmp.ge.s32.totalorder %v146, %v185
    %vm278 = vcmp.ge.s32.totalorder %v147, %v185
    %vm279 = vcmp.ge.s32.totalorder %v148, %v185
    %vm280 = vcmp.ge.s32.totalorder %v149, %v185
    %vm281 = vcmp.ge.s32.totalorder %v150, %v185
    %vm282 = vcmp.ge.s32.totalorder %v151, %v185
    %vm283 = vcmp.ge.s32.totalorder %v152, %v185
    %vm284 = vcmp.ge.s32.totalorder %v153, %v185
    %vm285 = vcmp.ge.s32.totalorder %v154, %v185
    %vm286 = vcmp.ge.s32.totalorder %v155, %v185
    %vm287 = vcmp.ge.s32.totalorder %v156, %v185
    %vm288 = vcmp.ge.s32.totalorder %v157, %v185
    %vm289 = vcmp.ge.s32.totalorder %v158, %v185
    %vm290 = vcmp.ge.s32.totalorder %v159, %v185
    %vm291 = vcmp.ge.s32.totalorder %v160, %v185
    %vm292 = vcmp.ge.s32.totalorder %v161, %v185
    %vm293 = vcmp.ge.s32.totalorder %v162, %v185
    %vm294 = vcmp.ge.s32.totalorder %v163, %v185
    %vm295 = vcmp.ge.s32.totalorder %v164, %v185
    %vm296 = vcmp.ge.s32.totalorder %v165, %v185
    %vm297 = vcmp.ge.s32.totalorder %v166, %v185
    %vm298 = vcmp.ge.s32.totalorder %v167, %v185
    %vm299 = vcmp.ge.s32.totalorder %v168, %v185
    %vm300 = vcmp.ge.s32.totalorder %v169, %v185
    %vm301 = vcmp.ge.s32.totalorder %v170, %v185
    %vm302 = vcmp.ge.s32.totalorder %v171, %v185
    %vm303 = vcmp.ge.s32.totalorder %v172, %v185
    %vm304 = vcmp.ge.s32.totalorder %v173, %v185
    %vm305 = vcmp.ge.s32.totalorder %v174, %v185
    %vm306 = vcmp.ge.s32.totalorder %v175, %v185
    %vm307 = vcmp.ge.s32.totalorder %v176, %v185
    %vm308 = vcmp.ge.s32.totalorder %v177, %v185
    %vm309 = vcmp.ge.s32.totalorder %v178, %v185
    %vm310 = vcmp.ge.s32.totalorder %v179, %v185
    %vm311 = vcmp.ge.s32.totalorder %v180, %v185
    %vm312 = vcmp.ge.s32.totalorder %v181, %v185
    %vm313 = vcmp.ge.s32.totalorder %v182, %v185
    %v314 = vadd.s32 %v185, 64
    %vm315 = vcmp.lt.s32.totalorder %v55, %v314
    %vm316 = vcmp.lt.s32.totalorder %v56, %v314
    %vm317 = vcmp.lt.s32.totalorder %v57, %v314
    %vm318 = vcmp.lt.s32.totalorder %v58, %v314
    %vm319 = vcmp.lt.s32.totalorder %v59, %v314
    %vm320 = vcmp.lt.s32.totalorder %v60, %v314
    %vm321 = vcmp.lt.s32.totalorder %v61, %v314
    %vm322 = vcmp.lt.s32.totalorder %v62, %v314
    %vm323 = vcmp.lt.s32.totalorder %v63, %v314
    %vm324 = vcmp.lt.s32.totalorder %v64, %v314
    %vm325 = vcmp.lt.s32.totalorder %v65, %v314
    %vm326 = vcmp.lt.s32.totalorder %v66, %v314
    %vm327 = vcmp.lt.s32.totalorder %v67, %v314
    %vm328 = vcmp.lt.s32.totalorder %v68, %v314
    %vm329 = vcmp.lt.s32.totalorder %v69, %v314
    %vm330 = vcmp.lt.s32.totalorder %v70, %v314
    %vm331 = vcmp.lt.s32.totalorder %v71, %v314
    %vm332 = vcmp.lt.s32.totalorder %v72, %v314
    %vm333 = vcmp.lt.s32.totalorder %v73, %v314
    %vm334 = vcmp.lt.s32.totalorder %v74, %v314
    %vm335 = vcmp.lt.s32.totalorder %v75, %v314
    %vm336 = vcmp.lt.s32.totalorder %v76, %v314
    %vm337 = vcmp.lt.s32.totalorder %v77, %v314
    %vm338 = vcmp.lt.s32.totalorder %v78, %v314
    %vm339 = vcmp.lt.s32.totalorder %v79, %v314
    %vm340 = vcmp.lt.s32.totalorder %v80, %v314
    %vm341 = vcmp.lt.s32.totalorder %v81, %v314
    %vm342 = vcmp.lt.s32.totalorder %v82, %v314
    %vm343 = vcmp.lt.s32.totalorder %v83, %v314
    %vm344 = vcmp.lt.s32.totalorder %v84, %v314
    %vm345 = vcmp.lt.s32.totalorder %v85, %v314
    %vm346 = vcmp.lt.s32.totalorder %v86, %v314
    %vm347 = vcmp.lt.s32.totalorder %v87, %v314
    %vm348 = vcmp.lt.s32.totalorder %v88, %v314
    %vm349 = vcmp.lt.s32.totalorder %v89, %v314
    %vm350 = vcmp.lt.s32.totalorder %v90, %v314
    %vm351 = vcmp.lt.s32.totalorder %v91, %v314
    %vm352 = vcmp.lt.s32.totalorder %v92, %v314
    %vm353 = vcmp.lt.s32.totalorder %v93, %v314
    %vm354 = vcmp.lt.s32.totalorder %v94, %v314
    %vm355 = vcmp.lt.s32.totalorder %v95, %v314
    %vm356 = vcmp.lt.s32.totalorder %v96, %v314
    %vm357 = vcmp.lt.s32.totalorder %v97, %v314
    %vm358 = vcmp.lt.s32.totalorder %v98, %v314
    %vm359 = vcmp.lt.s32.totalorder %v99, %v314
    %vm360 = vcmp.lt.s32.totalorder %v100, %v314
    %vm361 = vcmp.lt.s32.totalorder %v101, %v314
    %vm362 = vcmp.lt.s32.totalorder %v102, %v314
    %vm363 = vcmp.lt.s32.totalorder %v103, %v314
    %vm364 = vcmp.lt.s32.totalorder %v104, %v314
    %vm365 = vcmp.lt.s32.totalorder %v105, %v314
    %vm366 = vcmp.lt.s32.totalorder %v106, %v314
    %vm367 = vcmp.lt.s32.totalorder %v107, %v314
    %vm368 = vcmp.lt.s32.totalorder %v108, %v314
    %vm369 = vcmp.lt.s32.totalorder %v109, %v314
    %vm370 = vcmp.lt.s32.totalorder %v110, %v314
    %vm371 = vcmp.lt.s32.totalorder %v111, %v314
    %vm372 = vcmp.lt.s32.totalorder %v112, %v314
    %vm373 = vcmp.lt.s32.totalorder %v113, %v314
    %vm374 = vcmp.lt.s32.totalorder %v114, %v314
    %vm375 = vcmp.lt.s32.totalorder %v115, %v314
    %vm376 = vcmp.lt.s32.totalorder %v116, %v314
    %vm377 = vcmp.lt.s32.totalorder %v117, %v314
    %vm378 = vcmp.lt.s32.totalorder %v118, %v314
    %vm379 = vcmp.lt.s32.totalorder %v119, %v314
    %vm380 = vcmp.lt.s32.totalorder %v120, %v314
    %vm381 = vcmp.lt.s32.totalorder %v121, %v314
    %vm382 = vcmp.lt.s32.totalorder %v122, %v314
    %vm383 = vcmp.lt.s32.totalorder %v123, %v314
    %vm384 = vcmp.lt.s32.totalorder %v124, %v314
    %vm385 = vcmp.lt.s32.totalorder %v125, %v314
    %vm386 = vcmp.lt.s32.totalorder %v126, %v314
    %vm387 = vcmp.lt.s32.totalorder %v127, %v314
    %vm388 = vcmp.lt.s32.totalorder %v128, %v314
    %vm389 = vcmp.lt.s32.totalorder %v129, %v314
    %vm390 = vcmp.lt.s32.totalorder %v130, %v314
    %vm391 = vcmp.lt.s32.totalorder %v131, %v314
    %vm392 = vcmp.lt.s32.totalorder %v132, %v314
    %vm393 = vcmp.lt.s32.totalorder %v133, %v314
    %vm394 = vcmp.lt.s32.totalorder %v134, %v314
    %vm395 = vcmp.lt.s32.totalorder %v135, %v314
    %vm396 = vcmp.lt.s32.totalorder %v136, %v314
    %vm397 = vcmp.lt.s32.totalorder %v137, %v314
    %vm398 = vcmp.lt.s32.totalorder %v138, %v314
    %vm399 = vcmp.lt.s32.totalorder %v139, %v314
    %vm400 = vcmp.lt.s32.totalorder %v140, %v314
    %vm401 = vcmp.lt.s32.totalorder %v141, %v314
    %vm402 = vcmp.lt.s32.totalorder %v142, %v314
    %vm403 = vcmp.lt.s32.totalorder %v143, %v314
    %vm404 = vcmp.lt.s32.totalorder %v144, %v314
    %vm405 = vcmp.lt.s32.totalorder %v145, %v314
    %vm406 = vcmp.lt.s32.totalorder %v146, %v314
    %vm407 = vcmp.lt.s32.totalorder %v147, %v314
    %vm408 = vcmp.lt.s32.totalorder %v148, %v314
    %vm409 = vcmp.lt.s32.totalorder %v149, %v314
    %vm410 = vcmp.lt.s32.totalorder %v150, %v314
    %vm411 = vcmp.lt.s32.totalorder %v151, %v314
    %vm412 = vcmp.lt.s32.totalorder %v152, %v314
    %vm413 = vcmp.lt.s32.totalorder %v153, %v314
    %vm414 = vcmp.lt.s32.totalorder %v154, %v314
    %vm415 = vcmp.lt.s32.totalorder %v155, %v314
    %vm416 = vcmp.lt.s32.totalorder %v156, %v314
    %vm417 = vcmp.lt.s32.totalorder %v157, %v314
    %vm418 = vcmp.lt.s32.totalorder %v158, %v314
    %vm419 = vcmp.lt.s32.totalorder %v159, %v314
    %vm420 = vcmp.lt.s32.totalorder %v160, %v314
    %vm421 = vcmp.lt.s32.totalorder %v161, %v314
    %vm422 = vcmp.lt.s32.totalorder %v162, %v314
    %vm423 = vcmp.lt.s32.totalorder %v163, %v314
    %vm424 = vcmp.lt.s32.totalorder %v164, %v314
    %vm425 = vcmp.lt.s32.totalorder %v165, %v314
    %vm426 = vcmp.lt.s32.totalorder %v166, %v314
    %vm427 = vcmp.lt.s32.totalorder %v167, %v314
    %vm428 = vcmp.lt.s32.totalorder %v168, %v314
    %vm429 = vcmp.lt.s32.totalorder %v169, %v314
    %vm430 = vcmp.lt.s32.totalorder %v170, %v314
    %vm431 = vcmp.lt.s32.totalorder %v171, %v314
    %vm432 = vcmp.lt.s32.totalorder %v172, %v314
    %vm433 = vcmp.lt.s32.totalorder %v173, %v314
    %vm434 = vcmp.lt.s32.totalorder %v174, %v314
    %vm435 = vcmp.lt.s32.totalorder %v175, %v314
    %vm436 = vcmp.lt.s32.totalorder %v176, %v314
    %vm437 = vcmp.lt.s32.totalorder %v177, %v314
    %vm438 = vcmp.lt.s32.totalorder %v178, %v314
    %vm439 = vcmp.lt.s32.totalorder %v179, %v314
    %vm440 = vcmp.lt.s32.totalorder %v180, %v314
    %vm441 = vcmp.lt.s32.totalorder %v181, %v314
    %vm442 = vcmp.lt.s32.totalorder %v182, %v314
    %vm443 = vmand %vm186, %vm315
    %vm444 = vmand %vm187, %vm316
    %vm445 = vmand %vm188, %vm317
    %vm446 = vmand %vm189, %vm318
    %vm447 = vmand %vm190, %vm319
    %vm448 = vmand %vm191, %vm320
    %vm449 = vmand %vm192, %vm321
    %vm450 = vmand %vm193, %vm322
    %vm451 = vmand %vm194, %vm323
    %vm452 = vmand %vm195, %vm324
    %vm453 = vmand %vm196, %vm325
    %vm454 = vmand %vm197, %vm326
    %vm455 = vmand %vm198, %vm327
    %vm456 = vmand %vm199, %vm328
    %vm457 = vmand %vm200, %vm329
    %vm458 = vmand %vm201, %vm330
    %vm459 = vmand %vm202, %vm331
    %vm460 = vmand %vm203, %vm332
    %vm461 = vmand %vm204, %vm333
    %vm462 = vmand %vm205, %vm334
    %vm463 = vmand %vm206, %vm335
    %vm464 = vmand %vm207, %vm336
    %vm465 = vmand %vm208, %vm337
    %vm466 = vmand %vm209, %vm338
    %vm467 = vmand %vm210, %vm339
    %vm468 = vmand %vm211, %vm340
    %vm469 = vmand %vm212, %vm341
    %vm470 = vmand %vm213, %vm342
    %vm471 = vmand %vm214, %vm343
    %vm472 = vmand %vm215, %vm344
    %vm473 = vmand %vm216, %vm345
    %vm474 = vmand %vm217, %vm346
    %vm475 = vmand %vm218, %vm347
    %vm476 = vmand %vm219, %vm348
    %vm477 = vmand %vm220, %vm349
    %vm478 = vmand %vm221, %vm350
    %vm479 = vmand %vm222, %vm351
    %vm480 = vmand %vm223, %vm352
    %vm481 = vmand %vm224, %vm353
    %vm482 = vmand %vm225, %vm354
    %vm483 = vmand %vm226, %vm355
    %vm484 = vmand %vm227, %vm356
    %vm485 = vmand %vm228, %vm357
    %vm486 = vmand %vm229, %vm358
    %vm487 = vmand %vm230, %vm359
    %vm488 = vmand %vm231, %vm360
    %vm489 = vmand %vm232, %vm361
    %vm490 = vmand %vm233, %vm362
    %vm491 = vmand %vm234, %vm363
    %vm492 = vmand %vm235, %vm364
    %vm493 = vmand %vm236, %vm365
    %vm494 = vmand %vm237, %vm366
    %vm495 = vmand %vm238, %vm367
    %vm496 = vmand %vm239, %vm368
    %vm497 = vmand %vm240, %vm369
    %vm498 = vmand %vm241, %vm370
    %vm499 = vmand %vm242, %vm371
    %vm500 = vmand %vm243, %vm372
    %vm501 = vmand %vm244, %vm373
    %vm502 = vmand %vm245, %vm374
    %vm503 = vmand %vm246, %vm375
    %vm504 = vmand %vm247, %vm376
    %vm505 = vmand %vm248, %vm377
    %vm506 = vmand %vm249, %vm378
    %vm507 = vmand %vm250, %vm379
    %vm508 = vmand %vm251, %vm380
    %vm509 = vmand %vm252, %vm381
    %vm510 = vmand %vm253, %vm382
    %vm511 = vmand %vm254, %vm383
    %vm512 = vmand %vm255, %vm384
    %vm513 = vmand %vm256, %vm385
    %vm514 = vmand %vm257, %vm386
    %vm515 = vmand %vm258, %vm387
    %vm516 = vmand %vm259, %vm388
    %vm517 = vmand %vm260, %vm389
    %vm518 = vmand %vm261, %vm390
    %vm519 = vmand %vm262, %vm391
    %vm520 = vmand %vm263, %vm392
    %vm521 = vmand %vm264, %vm393
    %vm522 = vmand %vm265, %vm394
    %vm523 = vmand %vm266, %vm395
    %vm524 = vmand %vm267, %vm396
    %vm525 = vmand %vm268, %vm397
    %vm526 = vmand %vm269, %vm398
    %vm527 = vmand %vm270, %vm399
    %vm528 = vmand %vm271, %vm400
    %vm529 = vmand %vm272, %vm401
    %vm530 = vmand %vm273, %vm402
    %vm531 = vmand %vm274, %vm403
    %vm532 = vmand %vm275, %vm404
    %vm533 = vmand %vm276, %vm405
    %vm534 = vmand %vm277, %vm406
    %vm535 = vmand %vm278, %vm407
    %vm536 = vmand %vm279, %vm408
    %vm537 = vmand %vm280, %vm409
    %vm538 = vmand %vm281, %vm410
    %vm539 = vmand %vm282, %vm411
    %vm540 = vmand %vm283, %vm412
    %vm541 = vmand %vm284, %vm413
    %vm542 = vmand %vm285, %vm414
    %vm543 = vmand %vm286, %vm415
    %vm544 = vmand %vm287, %vm416
    %vm545 = vmand %vm288, %vm417
    %vm546 = vmand %vm289, %vm418
    %vm547 = vmand %vm290, %vm419
    %vm548 = vmand %vm291, %vm420
    %vm549 = vmand %vm292, %vm421
    %vm550 = vmand %vm293, %vm422
    %vm551 = vmand %vm294, %vm423
    %vm552 = vmand %vm295, %vm424
    %vm553 = vmand %vm296, %vm425
    %vm554 = vmand %vm297, %vm426
    %vm555 = vmand %vm298, %vm427
    %vm556 = vmand %vm299, %vm428
    %vm557 = vmand %vm300, %vm429
    %vm558 = vmand %vm301, %vm430
    %vm559 = vmand %vm302, %vm431
    %vm560 = vmand %vm303, %vm432
    %vm561 = vmand %vm304, %vm433
    %vm562 = vmand %vm305, %vm434
    %vm563 = vmand %vm306, %vm435
    %vm564 = vmand %vm307, %vm436
    %vm565 = vmand %vm308, %vm437
    %vm566 = vmand %vm309, %vm438
    %vm567 = vmand %vm310, %vm439
    %vm568 = vmand %vm311, %vm440
    %vm569 = vmand %vm312, %vm441
    %vm570 = vmand %vm313, %vm442
    %572 = vset.pattern.permute.xlu0 0
    %573 = vperm.xlu0 %572, %v46
    %v574 = vpop.permute.xlu0 %573
    %577 = vset.pattern.permute.xlu0 0
    %578 = vperm.xlu0 %577, %v47
    %v579 = vpop.permute.xlu0 %578
    %582 = vset.pattern.permute.xlu0 0
    %583 = vperm.xlu0 %582, %v48
    %v584 = vpop.permute.xlu0 %583
    %587 = vset.pattern.permute.xlu0 0
    %588 = vperm.xlu0 %587, %v49
    %v589 = vpop.permute.xlu0 %588
    %592 = vset.pattern.permute.xlu0 0
    %593 = vperm.xlu0 %592, %v50
    %v594 = vpop.permute.xlu0 %593
    %597 = vset.pattern.permute.xlu0 0
    %598 = vperm.xlu0 %597, %v51
    %v599 = vpop.permute.xlu0 %598
    %602 = vset.pattern.permute.xlu0 0
    %603 = vperm.xlu0 %602, %v52
    %v604 = vpop.permute.xlu0 %603
    %607 = vset.pattern.permute.xlu0 0
    %608 = vperm.xlu0 %607, %v53
    %v609 = vpop.permute.xlu0 %608
    %v611 = vsel %vm443, %v574, 0.0
    %v612 = vsel %vm444, %v579, 0.0
    %v613 = vsel %vm445, %v584, 0.0
    %v614 = vsel %vm446, %v589, 0.0
    %v615 = vsel %vm447, %v594, 0.0
    %v616 = vsel %vm448, %v599, 0.0
    %v617 = vsel %vm449, %v604, 0.0
    %v618 = vsel %vm450, %v609, 0.0
    %v619 = vsel %vm451, %v574, 0.0
    %v620 = vsel %vm452, %v579, 0.0
    %v621 = vsel %vm453, %v584, 0.0
    %v622 = vsel %vm454, %v589, 0.0
    %v623 = vsel %vm455, %v594, 0.0
    %v624 = vsel %vm456, %v599, 0.0
    %v625 = vsel %vm457, %v604, 0.0
    %v626 = vsel %vm458, %v609, 0.0
    %v627 = vsel %vm459, %v574, 0.0
    %v628 = vsel %vm460, %v579, 0.0
    %v629 = vsel %vm461, %v584, 0.0
    %v630 = vsel %vm462, %v589, 0.0
    %v631 = vsel %vm463, %v594, 0.0
    %v632 = vsel %vm464, %v599, 0.0
    %v633 = vsel %vm465, %v604, 0.0
    %v634 = vsel %vm466, %v609, 0.0
    %v635 = vsel %vm467, %v574, 0.0
    %v636 = vsel %vm468, %v579, 0.0
    %v637 = vsel %vm469, %v584, 0.0
    %v638 = vsel %vm470, %v589, 0.0
    %v639 = vsel %vm471, %v594, 0.0
    %v640 = vsel %vm472, %v599, 0.0
    %v641 = vsel %vm473, %v604, 0.0
    %v642 = vsel %vm474, %v609, 0.0
    %v643 = vsel %vm475, %v574, 0.0
    %v644 = vsel %vm476, %v579, 0.0
    %v645 = vsel %vm477, %v584, 0.0
    %v646 = vsel %vm478, %v589, 0.0
    %v647 = vsel %vm479, %v594, 0.0
    %v648 = vsel %vm480, %v599, 0.0
    %v649 = vsel %vm481, %v604, 0.0
    %v650 = vsel %vm482, %v609, 0.0
    %v651 = vsel %vm483, %v574, 0.0
    %v652 = vsel %vm484, %v579, 0.0
    %v653 = vsel %vm485, %v584, 0.0
    %v654 = vsel %vm486, %v589, 0.0
    %v655 = vsel %vm487, %v594, 0.0
    %v656 = vsel %vm488, %v599, 0.0
    %v657 = vsel %vm489, %v604, 0.0
    %v658 = vsel %vm490, %v609, 0.0
    %v659 = vsel %vm491, %v574, 0.0
    %v660 = vsel %vm492, %v579, 0.0
    %v661 = vsel %vm493, %v584, 0.0
    %v662 = vsel %vm494, %v589, 0.0
    %v663 = vsel %vm495, %v594, 0.0
    %v664 = vsel %vm496, %v599, 0.0
    %v665 = vsel %vm497, %v604, 0.0
    %v666 = vsel %vm498, %v609, 0.0
    %v667 = vsel %vm499, %v574, 0.0
    %v668 = vsel %vm500, %v579, 0.0
    %v669 = vsel %vm501, %v584, 0.0
    %v670 = vsel %vm502, %v589, 0.0
    %v671 = vsel %vm503, %v594, 0.0
    %v672 = vsel %vm504, %v599, 0.0
    %v673 = vsel %vm505, %v604, 0.0
    %v674 = vsel %vm506, %v609, 0.0
    %v675 = vsel %vm507, %v574, 0.0
    %v676 = vsel %vm508, %v579, 0.0
    %v677 = vsel %vm509, %v584, 0.0
    %v678 = vsel %vm510, %v589, 0.0
    %v679 = vsel %vm511, %v594, 0.0
    %v680 = vsel %vm512, %v599, 0.0
    %v681 = vsel %vm513, %v604, 0.0
    %v682 = vsel %vm514, %v609, 0.0
    %v683 = vsel %vm515, %v574, 0.0
    %v684 = vsel %vm516, %v579, 0.0
    %v685 = vsel %vm517, %v584, 0.0
    %v686 = vsel %vm518, %v589, 0.0
    %v687 = vsel %vm519, %v594, 0.0
    %v688 = vsel %vm520, %v599, 0.0
    %v689 = vsel %vm521, %v604, 0.0
    %v690 = vsel %vm522, %v609, 0.0
    %v691 = vsel %vm523, %v574, 0.0
    %v692 = vsel %vm524, %v579, 0.0
    %v693 = vsel %vm525, %v584, 0.0
    %v694 = vsel %vm526, %v589, 0.0
    %v695 = vsel %vm527, %v594, 0.0
    %v696 = vsel %vm528, %v599, 0.0
    %v697 = vsel %vm529, %v604, 0.0
    %v698 = vsel %vm530, %v609, 0.0
    %v699 = vsel %vm531, %v574, 0.0
    %v700 = vsel %vm532, %v579, 0.0
    %v701 = vsel %vm533, %v584, 0.0
    %v702 = vsel %vm534, %v589, 0.0
    %v703 = vsel %vm535, %v594, 0.0
    %v704 = vsel %vm536, %v599, 0.0
    %v705 = vsel %vm537, %v604, 0.0
    %v706 = vsel %vm538, %v609, 0.0
    %v707 = vsel %vm539, %v574, 0.0
    %v708 = vsel %vm540, %v579, 0.0
    %v709 = vsel %vm541, %v584, 0.0
    %v710 = vsel %vm542, %v589, 0.0
    %v711 = vsel %vm543, %v594, 0.0
    %v712 = vsel %vm544, %v599, 0.0
    %v713 = vsel %vm545, %v604, 0.0
    %v714 = vsel %vm546, %v609, 0.0
    %v715 = vsel %vm547, %v574, 0.0
    %v716 = vsel %vm548, %v579, 0.0
    %v717 = vsel %vm549, %v584, 0.0
    %v718 = vsel %vm550, %v589, 0.0
    %v719 = vsel %vm551, %v594, 0.0
    %v720 = vsel %vm552, %v599, 0.0
    %v721 = vsel %vm553, %v604, 0.0
    %v722 = vsel %vm554, %v609, 0.0
    %v723 = vsel %vm555, %v574, 0.0
    %v724 = vsel %vm556, %v579, 0.0
    %v725 = vsel %vm557, %v584, 0.0
    %v726 = vsel %vm558, %v589, 0.0
    %v727 = vsel %vm559, %v594, 0.0
    %v728 = vsel %vm560, %v599, 0.0
    %v729 = vsel %vm561, %v604, 0.0
    %v730 = vsel %vm562, %v609, 0.0
    %v731 = vsel %vm563, %v574, 0.0
    %v732 = vsel %vm564, %v579, 0.0
    %v733 = vsel %vm565, %v584, 0.0
    %v734 = vsel %vm566, %v589, 0.0
    %v735 = vsel %vm567, %v594, 0.0
    %v736 = vsel %vm568, %v599, 0.0
    %v737 = vsel %vm569, %v604, 0.0
    %v738 = vsel %vm570, %v609, 0.0
    %v739 = vld [vmem:[#allocation2] sm:$0xff]
    %v740 = vld [vmem:[#allocation2 + $0x8] sm:$0xff]
    %v741 = vld [vmem:[#allocation2 + $0x10] sm:$0xff]
    %v742 = vld [vmem:[#allocation2 + $0x18] sm:$0xff]
    %v743 = vld [vmem:[#allocation2 + $0x20] sm:$0xff]
    %v744 = vld [vmem:[#allocation2 + $0x28] sm:$0xff]
    %v745 = vld [vmem:[#allocation2 + $0x30] sm:$0xff]
    %v746 = vld [vmem:[#allocation2 + $0x38] sm:$0xff]
    %v747 = vld [vmem:[#allocation2 + $0x40] sm:$0xff]
    %v748 = vld [vmem:[#allocation2 + $0x48] sm:$0xff]
    %v749 = vld [vmem:[#allocation2 + $0x50] sm:$0xff]
    %v750 = vld [vmem:[#allocation2 + $0x58] sm:$0xff]
    %v751 = vld [vmem:[#allocation2 + $0x60] sm:$0xff]
    %v752 = vld [vmem:[#allocation2 + $0x68] sm:$0xff]
    %v753 = vld [vmem:[#allocation2 + $0x70] sm:$0xff]
    %v754 = vld [vmem:[#allocation2 + $0x78] sm:$0xff]
    %v755 = vld [vmem:[#allocation2 + $0x80] sm:$0xff]
    %v756 = vld [vmem:[#allocation2 + $0x88] sm:$0xff]
    %v757 = vld [vmem:[#allocation2 + $0x90] sm:$0xff]
    %v758 = vld [vmem:[#allocation2 + $0x98] sm:$0xff]
    %v759 = vld [vmem:[#allocation2 + $0xa0] sm:$0xff]
    %v760 = vld [vmem:[#allocation2 + $0xa8] sm:$0xff]
    %v761 = vld [vmem:[#allocation2 + $0xb0] sm:$0xff]
    %v762 = vld [vmem:[#allocation2 + $0xb8] sm:$0xff]
    %v763 = vld [vmem:[#allocation2 + $0xc0] sm:$0xff]
    %v764 = vld [vmem:[#allocation2 + $0xc8] sm:$0xff]
    %v765 = vld [vmem:[#allocation2 + $0xd0] sm:$0xff]
    %v766 = vld [vmem:[#allocation2 + $0xd8] sm:$0xff]
    %v767 = vld [vmem:[#allocation2 + $0xe0] sm:$0xff]
    %v768 = vld [vmem:[#allocation2 + $0xe8] sm:$0xff]
    %v769 = vld [vmem:[#allocation2 + $0xf0] sm:$0xff]
    %v770 = vld [vmem:[#allocation2 + $0xf8] sm:$0xff]
    %v771 = vld [vmem:[#allocation2 + $0x100] sm:$0xff]
    %v772 = vld [vmem:[#allocation2 + $0x108] sm:$0xff]
    %v773 = vld [vmem:[#allocation2 + $0x110] sm:$0xff]
    %v774 = vld [vmem:[#allocation2 + $0x118] sm:$0xff]
    %v775 = vld [vmem:[#allocation2 + $0x120] sm:$0xff]
    %v776 = vld [vmem:[#allocation2 + $0x128] sm:$0xff]
    %v777 = vld [vmem:[#allocation2 + $0x130] sm:$0xff]
    %v778 = vld [vmem:[#allocation2 + $0x138] sm:$0xff]
    %v779 = vld [vmem:[#allocation2 + $0x140] sm:$0xff]
    %v780 = vld [vmem:[#allocation2 + $0x148] sm:$0xff]
    %v781 = vld [vmem:[#allocation2 + $0x150] sm:$0xff]
    %v782 = vld [vmem:[#allocation2 + $0x158] sm:$0xff]
    %v783 = vld [vmem:[#allocation2 + $0x160] sm:$0xff]
    %v784 = vld [vmem:[#allocation2 + $0x168] sm:$0xff]
    %v785 = vld [vmem:[#allocation2 + $0x170] sm:$0xff]
    %v786 = vld [vmem:[#allocation2 + $0x178] sm:$0xff]
    %v787 = vunpack.c.l.bf16 %v739
    %v788 = vunpack.c.h.bf16 %v739
    %v789 = vunpack.c.l.bf16 %v740
    %v790 = vunpack.c.h.bf16 %v740
    %v791 = vunpack.c.l.bf16 %v741
    %v792 = vunpack.c.h.bf16 %v741
    %v793 = vunpack.c.l.bf16 %v742
    %v794 = vunpack.c.h.bf16 %v742
    %v795 = vunpack.c.l.bf16 %v743
    %v796 = vunpack.c.h.bf16 %v743
    %v797 = vunpack.c.l.bf16 %v744
    %v798 = vunpack.c.h.bf16 %v744
    %v799 = vunpack.c.l.bf16 %v745
    %v800 = vunpack.c.h.bf16 %v745
    %v801 = vunpack.c.l.bf16 %v746
    %v802 = vunpack.c.h.bf16 %v746
    %v803 = vunpack.c.l.bf16 %v747
    %v804 = vunpack.c.h.bf16 %v747
    %v805 = vunpack.c.l.bf16 %v748
    %v806 = vunpack.c.h.bf16 %v748
    %v807 = vunpack.c.l.bf16 %v749
    %v808 = vunpack.c.h.bf16 %v749
    %v809 = vunpack.c.l.bf16 %v750
    %v810 = vunpack.c.h.bf16 %v750
    %v811 = vunpack.c.l.bf16 %v751
    %v812 = vunpack.c.h.bf16 %v751
    %v813 = vunpack.c.l.bf16 %v752
    %v814 = vunpack.c.h.bf16 %v752
    %v815 = vunpack.c.l.bf16 %v753
    %v816 = vunpack.c.h.bf16 %v753
    %v817 = vunpack.c.l.bf16 %v754
    %v818 = vunpack.c.h.bf16 %v754
    %v819 = vunpack.c.l.bf16 %v755
    %v820 = vunpack.c.h.bf16 %v755
    %v821 = vunpack.c.l.bf16 %v756
    %v822 = vunpack.c.h.bf16 %v756
    %v823 = vunpack.c.l.bf16 %v757
    %v824 = vunpack.c.h.bf16 %v757
    %v825 = vunpack.c.l.bf16 %v758
    %v826 = vunpack.c.h.bf16 %v758
    %v827 = vunpack.c.l.bf16 %v759
    %v828 = vunpack.c.h.bf16 %v759
    %v829 = vunpack.c.l.bf16 %v760
    %v830 = vunpack.c.h.bf16 %v760
    %v831 = vunpack.c.l.bf16 %v761
    %v832 = vunpack.c.h.bf16 %v761
    %v833 = vunpack.c.l.bf16 %v762
    %v834 = vunpack.c.h.bf16 %v762
    %v835 = vunpack.c.l.bf16 %v763
    %v836 = vunpack.c.h.bf16 %v763
    %v837 = vunpack.c.l.bf16 %v764
    %v838 = vunpack.c.h.bf16 %v764
    %v839 = vunpack.c.l.bf16 %v765
    %v840 = vunpack.c.h.bf16 %v765
    %v841 = vunpack.c.l.bf16 %v766
    %v842 = vunpack.c.h.bf16 %v766
    %v843 = vunpack.c.l.bf16 %v767
    %v844 = vunpack.c.h.bf16 %v767
    %v845 = vunpack.c.l.bf16 %v768
    %v846 = vunpack.c.h.bf16 %v768
    %v847 = vunpack.c.l.bf16 %v769
    %v848 = vunpack.c.h.bf16 %v769
    %v849 = vunpack.c.l.bf16 %v770
    %v850 = vunpack.c.h.bf16 %v770
    %v851 = vunpack.c.l.bf16 %v771
    %v852 = vunpack.c.h.bf16 %v771
    %v853 = vunpack.c.l.bf16 %v772
    %v854 = vunpack.c.h.bf16 %v772
    %v855 = vunpack.c.l.bf16 %v773
    %v856 = vunpack.c.h.bf16 %v773
    %v857 = vunpack.c.l.bf16 %v774
    %v858 = vunpack.c.h.bf16 %v774
    %v859 = vunpack.c.l.bf16 %v775
    %v860 = vunpack.c.h.bf16 %v775
    %v861 = vunpack.c.l.bf16 %v776
    %v862 = vunpack.c.h.bf16 %v776
    %v863 = vunpack.c.l.bf16 %v777
    %v864 = vunpack.c.h.bf16 %v777
    %v865 = vunpack.c.l.bf16 %v778
    %v866 = vunpack.c.h.bf16 %v778
    %v867 = vunpack.c.l.bf16 %v779
    %v868 = vunpack.c.h.bf16 %v779
    %v869 = vunpack.c.l.bf16 %v780
    %v870 = vunpack.c.h.bf16 %v780
    %v871 = vunpack.c.l.bf16 %v781
    %v872 = vunpack.c.h.bf16 %v781
    %v873 = vunpack.c.l.bf16 %v782
    %v874 = vunpack.c.h.bf16 %v782
    %v875 = vunpack.c.l.bf16 %v783
    %v876 = vunpack.c.h.bf16 %v783
    %v877 = vunpack.c.l.bf16 %v784
    %v878 = vunpack.c.h.bf16 %v784
    %v879 = vunpack.c.l.bf16 %v785
    %v880 = vunpack.c.h.bf16 %v785
    %v881 = vunpack.c.l.bf16 %v786
    %v882 = vunpack.c.h.bf16 %v786
    %v883 = vld [vmem:[%s2] sm:$0xff]
    %v884 = vld [vmem:[%s2 + $0x8] sm:$0xff]
    %v885 = vld [vmem:[%s2 + $0x10] sm:$0xff]
    %v886 = vld [vmem:[%s2 + $0x18] sm:$0xff]
    %v887 = vld [vmem:[%s2 + $0x20] sm:$0xff]
    %v888 = vld [vmem:[%s2 + $0x28] sm:$0xff]
    %v889 = vld [vmem:[%s2 + $0x30] sm:$0xff]
    %v890 = vld [vmem:[%s2 + $0x38] sm:$0xff]
    %v891 = vld [vmem:[%s2 + $0x40] sm:$0xff]
    %v892 = vld [vmem:[%s2 + $0x48] sm:$0xff]
    %v893 = vld [vmem:[%s2 + $0x50] sm:$0xff]
    %v894 = vld [vmem:[%s2 + $0x58] sm:$0xff]
    %895 = vmatprep.subr.mxu0 0.0
    %896 = vmatpush1.msra.mxu0 %v626
    %897 = vmatprep.subr.mxu0 0.0
    %898 = vmatpush1.msra.mxu0 %v625
    %899 = vmatprep.subr.mxu0 0.0
    %900 = vmatpush1.msra.mxu0 %v624
    %901 = vmatprep.subr.mxu0 0.0
    %902 = vmatpush1.msra.mxu0 %v623
    %903 = vmatprep.subr.mxu0 0.0
    %904 = vmatpush1.msra.mxu0 %v622
    %905 = vmatprep.subr.mxu0 0.0
    %906 = vmatpush1.msra.mxu0 %v621
    %907 = vmatprep.subr.mxu0 0.0
    %908 = vmatpush1.msra.mxu0 %v620
    %909 = vmatprep.subr.mxu0 0.0
    %910 = vmatpush1.msra.mxu0 %v619
    %911 = vmatprep.subr.mxu0 0.0
    %912 = vmatpush1.msra.mxu0 %v618
    %913 = vmatprep.subr.mxu0 0.0
    %914 = vmatpush1.msra.mxu0 %v617
    %915 = vmatprep.subr.mxu0 0.0
    %916 = vmatpush1.msra.mxu0 %v616
    %917 = vmatprep.subr.mxu0 0.0
    %918 = vmatpush1.msra.mxu0 %v615
    %919 = vmatprep.subr.mxu0 0.0
    %920 = vmatpush1.msra.mxu0 %v614
    %921 = vmatprep.subr.mxu0 0.0
    %922 = vmatpush1.msra.mxu0 %v613
    %923 = vmatprep.subr.mxu0 0.0
    %924 = vmatpush1.msra.mxu0 %v612
    %925 = vmatprep.subr.mxu0 0.0
    %926 = vmatpush1.msra.mxu0 %v611
    %927 = vmatprep.subr.mxu0 0.0
    %928 = vmatpush2.msra.mxu0 %v642
    %929 = vmatprep.subr.mxu0 0.0
    %930 = vmatpush2.msra.mxu0 %v641
    %931 = vmatprep.subr.mxu0 0.0
    %932 = vmatpush2.msra.mxu0 %v640
    %933 = vmatprep.subr.mxu0 0.0
    %934 = vmatpush2.msra.mxu0 %v639
    %935 = vmatprep.subr.mxu0 0.0
    %936 = vmatpush2.msra.mxu0 %v638
    %937 = vmatprep.subr.mxu0 0.0
    %938 = vmatpush2.msra.mxu0 %v637
    %939 = vmatprep.subr.mxu0 0.0
    %940 = vmatpush2.msra.mxu0 %v636
    %941 = vmatprep.subr.mxu0 0.0
    %942 = vmatpush2.msra.mxu0 %v635
    %943 = vmatprep.subr.mxu0 0.0
    %944 = vmatpush2.msra.mxu0 %v634
    %945 = vmatprep.subr.mxu0 0.0
    %946 = vmatpush2.msra.mxu0 %v633
    %947 = vmatprep.subr.mxu0 0.0
    %948 = vmatpush2.msra.mxu0 %v632
    %949 = vmatprep.subr.mxu0 0.0
    %950 = vmatpush2.msra.mxu0 %v631
    %951 = vmatprep.subr.mxu0 0.0
    %952 = vmatpush2.msra.mxu0 %v630
    %953 = vmatprep.subr.mxu0 0.0
    %954 = vmatpush2.msra.mxu0 %v629
    %955 = vmatprep.subr.mxu0 0.0
    %956 = vmatpush2.msra.mxu0 %v628
    %957 = vmatprep.subr.mxu0 0.0
    %958 = vmatpush2.msra.mxu0 %v627
    %959 = vmatprep.mubr.f32.mxu0 %v788
    %960 = vmatmul.mubr.f32.gmra.mxu0 %v787
    %v961 = vpop.f32.mrf.mxu0
    %v962 = vadd.f32 %v883, %v961
    %v963 = vpop.f32.mrf.mxu0
    %964 = vmatprep.mubr.f32.mxu0 %v796
    %965 = vmatmul.mubr.f32.gmra.mxu0 %v795
    %v966 = vpop.f32.mrf.mxu0
    %v967 = vadd.f32 %v884, %v966
    %v968 = vpop.f32.mrf.mxu0
    %969 = vmatprep.mubr.f32.mxu0 %v804
    %970 = vmatmul.mubr.f32.gmra.mxu0 %v803
    %v971 = vpop.f32.mrf.mxu0
    %v972 = vadd.f32 %v885, %v971
    %v973 = vpop.f32.mrf.mxu0
    %974 = vmatprep.mubr.f32.mxu0 %v812
    %975 = vmatmul.mubr.f32.gmra.mxu0 %v811
    %v976 = vpop.f32.mrf.mxu0
    %v977 = vadd.f32 %v886, %v976
    %v978 = vpop.f32.mrf.mxu0
    %979 = vmatprep.mubr.f32.mxu0 %v820
    %980 = vmatmul.mubr.f32.gmra.mxu0 %v819
    %v981 = vpop.f32.mrf.mxu0
    %v982 = vadd.f32 %v887, %v981
    %v983 = vpop.f32.mrf.mxu0
    %984 = vmatprep.mubr.f32.mxu0 %v828
    %985 = vmatmul.mubr.f32.gmra.mxu0 %v827
    %v986 = vpop.f32.mrf.mxu0
    %v987 = vadd.f32 %v888, %v986
    %v988 = vpop.f32.mrf.mxu0
    %989 = vmatprep.mubr.f32.mxu0 %v836
    %990 = vmatmul.mubr.f32.gmra.mxu0 %v835
    %v991 = vpop.f32.mrf.mxu0
    %v992 = vadd.f32 %v889, %v991
    %v993 = vpop.f32.mrf.mxu0
    %994 = vmatprep.mubr.f32.mxu0 %v844
    %995 = vmatmul.mubr.f32.gmra.mxu0 %v843
    %v996 = vpop.f32.mrf.mxu0
    %v997 = vadd.f32 %v890, %v996
    %v998 = vpop.f32.mrf.mxu0
    %999 = vmatprep.mubr.f32.mxu0 %v852
    %1000 = vmatmul.mubr.f32.gmra.mxu0 %v851
    %v1001 = vpop.f32.mrf.mxu0
    %v1002 = vadd.f32 %v891, %v1001
    %v1003 = vpop.f32.mrf.mxu0
    %1004 = vmatprep.mubr.f32.mxu0 %v860
    %1005 = vmatmul.mubr.f32.gmra.mxu0 %v859
    %v1006 = vpop.f32.mrf.mxu0
    %v1007 = vadd.f32 %v892, %v1006
    %v1008 = vpop.f32.mrf.mxu0
    %1009 = vmatprep.mubr.f32.mxu0 %v868
    %1010 = vmatmul.mubr.f32.gmra.mxu0 %v867
    %v1011 = vpop.f32.mrf.mxu0
    %v1012 = vadd.f32 %v893, %v1011
    %v1013 = vpop.f32.mrf.mxu0
    %1014 = vmatprep.mubr.f32.mxu0 %v876
    %1015 = vmatmul.mubr.f32.gmra.mxu0 %v875
    %v1016 = vpop.f32.mrf.mxu0
    %v1017 = vadd.f32 %v894, %v1016
    %v1018 = vpop.f32.mrf.mxu0
    %1019 = vdwg.mxu0
    %1020 = vmatprep.subr.mxu0 0.0
    %1021 = vmatpush1.msra.mxu0 %v658
    %1022 = vmatprep.subr.mxu0 0.0
    %1023 = vmatpush1.msra.mxu0 %v657
    %1024 = vmatprep.subr.mxu0 0.0
    %1025 = vmatpush1.msra.mxu0 %v656
    %1026 = vmatprep.subr.mxu0 0.0
    %1027 = vmatpush1.msra.mxu0 %v655
    %1028 = vmatprep.subr.mxu0 0.0
    %1029 = vmatpush1.msra.mxu0 %v654
    %1030 = vmatprep.subr.mxu0 0.0
    %1031 = vmatpush1.msra.mxu0 %v653
    %1032 = vmatprep.subr.mxu0 0.0
    %1033 = vmatpush1.msra.mxu0 %v652
    %1034 = vmatprep.subr.mxu0 0.0
    %1035 = vmatpush1.msra.mxu0 %v651
    %1036 = vmatprep.subr.mxu0 0.0
    %1037 = vmatpush1.msra.mxu0 %v650
    %1038 = vmatprep.subr.mxu0 0.0
    %1039 = vmatpush1.msra.mxu0 %v649
    %1040 = vmatprep.subr.mxu0 0.0
    %1041 = vmatpush1.msra.mxu0 %v648
    %1042 = vmatprep.subr.mxu0 0.0
    %1043 = vmatpush1.msra.mxu0 %v647
    %1044 = vmatprep.subr.mxu0 0.0
    %1045 = vmatpush1.msra.mxu0 %v646
    %1046 = vmatprep.subr.mxu0 0.0
    %1047 = vmatpush1.msra.mxu0 %v645
    %1048 = vmatprep.subr.mxu0 0.0
    %1049 = vmatpush1.msra.mxu0 %v644
    %1050 = vmatprep.subr.mxu0 0.0
    %1051 = vmatpush1.msra.mxu0 %v643
    %1052 = vmatprep.subr.mxu0 0.0
    %1053 = vmatpush2.msra.mxu0 %v674
    %1054 = vmatprep.subr.mxu0 0.0
    %1055 = vmatpush2.msra.mxu0 %v673
    %1056 = vmatprep.subr.mxu0 0.0
    %1057 = vmatpush2.msra.mxu0 %v672
    %1058 = vmatprep.subr.mxu0 0.0
    %1059 = vmatpush2.msra.mxu0 %v671
    %1060 = vmatprep.subr.mxu0 0.0
    %1061 = vmatpush2.msra.mxu0 %v670
    %1062 = vmatprep.subr.mxu0 0.0
    %1063 = vmatpush2.msra.mxu0 %v669
    %1064 = vmatprep.subr.mxu0 0.0
    %1065 = vmatpush2.msra.mxu0 %v668
    %1066 = vmatprep.subr.mxu0 0.0
    %1067 = vmatpush2.msra.mxu0 %v667
    %1068 = vmatprep.subr.mxu0 0.0
    %1069 = vmatpush2.msra.mxu0 %v666
    %1070 = vmatprep.subr.mxu0 0.0
    %1071 = vmatpush2.msra.mxu0 %v665
    %1072 = vmatprep.subr.mxu0 0.0
    %1073 = vmatpush2.msra.mxu0 %v664
    %1074 = vmatprep.subr.mxu0 0.0
    %1075 = vmatpush2.msra.mxu0 %v663
    %1076 = vmatprep.subr.mxu0 0.0
    %1077 = vmatpush2.msra.mxu0 %v662
    %1078 = vmatprep.subr.mxu0 0.0
    %1079 = vmatpush2.msra.mxu0 %v661
    %1080 = vmatprep.subr.mxu0 0.0
    %1081 = vmatpush2.msra.mxu0 %v660
    %1082 = vmatprep.subr.mxu0 0.0
    %1083 = vmatpush2.msra.mxu0 %v659
    %1084 = vmatprep.mubr.f32.mxu0 %v790
    %1085 = vmatmul.mubr.f32.gmra.mxu0 %v789
    %v1086 = vpop.f32.mrf.mxu0
    %v1087 = vadd.f32 %v962, %v1086
    %v1088 = vpop.f32.mrf.mxu0
    %1089 = vmatprep.mubr.f32.mxu0 %v798
    %1090 = vmatmul.mubr.f32.gmra.mxu0 %v797
    %v1091 = vpop.f32.mrf.mxu0
    %v1092 = vadd.f32 %v967, %v1091
    %v1093 = vpop.f32.mrf.mxu0
    %1094 = vmatprep.mubr.f32.mxu0 %v806
    %1095 = vmatmul.mubr.f32.gmra.mxu0 %v805
    %v1096 = vpop.f32.mrf.mxu0
    %v1097 = vadd.f32 %v972, %v1096
    %v1098 = vpop.f32.mrf.mxu0
    %1099 = vmatprep.mubr.f32.mxu0 %v814
    %1100 = vmatmul.mubr.f32.gmra.mxu0 %v813
    %v1101 = vpop.f32.mrf.mxu0
    %v1102 = vadd.f32 %v977, %v1101
    %v1103 = vpop.f32.mrf.mxu0
    %1104 = vmatprep.mubr.f32.mxu0 %v822
    %1105 = vmatmul.mubr.f32.gmra.mxu0 %v821
    %v1106 = vpop.f32.mrf.mxu0
    %v1107 = vadd.f32 %v982, %v1106
    %v1108 = vpop.f32.mrf.mxu0
    %1109 = vmatprep.mubr.f32.mxu0 %v830
    %1110 = vmatmul.mubr.f32.gmra.mxu0 %v829
    %v1111 = vpop.f32.mrf.mxu0
    %v1112 = vadd.f32 %v987, %v1111
    %v1113 = vpop.f32.mrf.mxu0
    %1114 = vmatprep.mubr.f32.mxu0 %v838
    %1115 = vmatmul.mubr.f32.gmra.mxu0 %v837
    %v1116 = vpop.f32.mrf.mxu0
    %v1117 = vadd.f32 %v992, %v1116
    %v1118 = vpop.f32.mrf.mxu0
    %1119 = vmatprep.mubr.f32.mxu0 %v846
    %1120 = vmatmul.mubr.f32.gmra.mxu0 %v845
    %v1121 = vpop.f32.mrf.mxu0
    %v1122 = vadd.f32 %v997, %v1121
    %v1123 = vpop.f32.mrf.mxu0
    %1124 = vmatprep.mubr.f32.mxu0 %v854
    %1125 = vmatmul.mubr.f32.gmra.mxu0 %v853
    %v1126 = vpop.f32.mrf.mxu0
    %v1127 = vadd.f32 %v1002, %v1126
    %v1128 = vpop.f32.mrf.mxu0
    %1129 = vmatprep.mubr.f32.mxu0 %v862
    %1130 = vmatmul.mubr.f32.gmra.mxu0 %v861
    %v1131 = vpop.f32.mrf.mxu0
    %v1132 = vadd.f32 %v1007, %v1131
    %v1133 = vpop.f32.mrf.mxu0
    %1134 = vmatprep.mubr.f32.mxu0 %v870
    %1135 = vmatmul.mubr.f32.gmra.mxu0 %v869
    %v1136 = vpop.f32.mrf.mxu0
    %v1137 = vadd.f32 %v1012, %v1136
    %v1138 = vpop.f32.mrf.mxu0
    %1139 = vmatprep.mubr.f32.mxu0 %v878
    %1140 = vmatmul.mubr.f32.gmra.mxu0 %v877
    %v1141 = vpop.f32.mrf.mxu0
    %v1142 = vadd.f32 %v1017, %v1141
    %v1143 = vpop.f32.mrf.mxu0
    %1144 = vdwg.mxu0
    %1145 = vmatprep.subr.mxu0 0.0
    %1146 = vmatpush1.msra.mxu0 %v690
    %1147 = vmatprep.subr.mxu0 0.0
    %1148 = vmatpush1.msra.mxu0 %v689
    %1149 = vmatprep.subr.mxu0 0.0
    %1150 = vmatpush1.msra.mxu0 %v688
    %1151 = vmatprep.subr.mxu0 0.0
    %1152 = vmatpush1.msra.mxu0 %v687
    %1153 = vmatprep.subr.mxu0 0.0
    %1154 = vmatpush1.msra.mxu0 %v686
    %1155 = vmatprep.subr.mxu0 0.0
    %1156 = vmatpush1.msra.mxu0 %v685
    %1157 = vmatprep.subr.mxu0 0.0
    %1158 = vmatpush1.msra.mxu0 %v684
    %1159 = vmatprep.subr.mxu0 0.0
    %1160 = vmatpush1.msra.mxu0 %v683
    %1161 = vmatprep.subr.mxu0 0.0
    %1162 = vmatpush1.msra.mxu0 %v682
    %1163 = vmatprep.subr.mxu0 0.0
    %1164 = vmatpush1.msra.mxu0 %v681
    %1165 = vmatprep.subr.mxu0 0.0
    %1166 = vmatpush1.msra.mxu0 %v680
    %1167 = vmatprep.subr.mxu0 0.0
    %1168 = vmatpush1.msra.mxu0 %v679
    %1169 = vmatprep.subr.mxu0 0.0
    %1170 = vmatpush1.msra.mxu0 %v678
    %1171 = vmatprep.subr.mxu0 0.0
    %1172 = vmatpush1.msra.mxu0 %v677
    %1173 = vmatprep.subr.mxu0 0.0
    %1174 = vmatpush1.msra.mxu0 %v676
    %1175 = vmatprep.subr.mxu0 0.0
    %1176 = vmatpush1.msra.mxu0 %v675
    %1177 = vmatprep.subr.mxu0 0.0
    %1178 = vmatpush2.msra.mxu0 %v706
    %1179 = vmatprep.subr.mxu0 0.0
    %1180 = vmatpush2.msra.mxu0 %v705
    %1181 = vmatprep.subr.mxu0 0.0
    %1182 = vmatpush2.msra.mxu0 %v704
    %1183 = vmatprep.subr.mxu0 0.0
    %1184 = vmatpush2.msra.mxu0 %v703
    %1185 = vmatprep.subr.mxu0 0.0
    %1186 = vmatpush2.msra.mxu0 %v702
    %1187 = vmatprep.subr.mxu0 0.0
    %1188 = vmatpush2.msra.mxu0 %v701
    %1189 = vmatprep.subr.mxu0 0.0
    %1190 = vmatpush2.msra.mxu0 %v700
    %1191 = vmatprep.subr.mxu0 0.0
    %1192 = vmatpush2.msra.mxu0 %v699
    %1193 = vmatprep.subr.mxu0 0.0
    %1194 = vmatpush2.msra.mxu0 %v698
    %1195 = vmatprep.subr.mxu0 0.0
    %1196 = vmatpush2.msra.mxu0 %v697
    %1197 = vmatprep.subr.mxu0 0.0
    %1198 = vmatpush2.msra.mxu0 %v696
    %1199 = vmatprep.subr.mxu0 0.0
    %1200 = vmatpush2.msra.mxu0 %v695
    %1201 = vmatprep.subr.mxu0 0.0
    %1202 = vmatpush2.msra.mxu0 %v694
    %1203 = vmatprep.subr.mxu0 0.0
    %1204 = vmatpush2.msra.mxu0 %v693
    %1205 = vmatprep.subr.mxu0 0.0
    %1206 = vmatpush2.msra.mxu0 %v692
    %1207 = vmatprep.subr.mxu0 0.0
    %1208 = vmatpush2.msra.mxu0 %v691
    %1209 = vmatprep.mubr.f32.mxu0 %v792
    %1210 = vmatmul.mubr.f32.gmra.mxu0 %v791
    %v1211 = vpop.f32.mrf.mxu0
    %v1212 = vadd.f32 %v1087, %v1211
    %v1213 = vpop.f32.mrf.mxu0
    %1214 = vmatprep.mubr.f32.mxu0 %v800
    %1215 = vmatmul.mubr.f32.gmra.mxu0 %v799
    %v1216 = vpop.f32.mrf.mxu0
    %v1217 = vadd.f32 %v1092, %v1216
    %v1218 = vpop.f32.mrf.mxu0
    %1219 = vmatprep.mubr.f32.mxu0 %v808
    %1220 = vmatmul.mubr.f32.gmra.mxu0 %v807
    %v1221 = vpop.f32.mrf.mxu0
    %v1222 = vadd.f32 %v1097, %v1221
    %v1223 = vpop.f32.mrf.mxu0
    %1224 = vmatprep.mubr.f32.mxu0 %v816
    %1225 = vmatmul.mubr.f32.gmra.mxu0 %v815
    %v1226 = vpop.f32.mrf.mxu0
    %v1227 = vadd.f32 %v1102, %v1226
    %v1228 = vpop.f32.mrf.mxu0
    %1229 = vmatprep.mubr.f32.mxu0 %v824
    %1230 = vmatmul.mubr.f32.gmra.mxu0 %v823
    %v1231 = vpop.f32.mrf.mxu0
    %v1232 = vadd.f32 %v1107, %v1231
    %v1233 = vpop.f32.mrf.mxu0
    %1234 = vmatprep.mubr.f32.mxu0 %v832
    %1235 = vmatmul.mubr.f32.gmra.mxu0 %v831
    %v1236 = vpop.f32.mrf.mxu0
    %v1237 = vadd.f32 %v1112, %v1236
    %v1238 = vpop.f32.mrf.mxu0
    %1239 = vmatprep.mubr.f32.mxu0 %v840
    %1240 = vmatmul.mubr.f32.gmra.mxu0 %v839
    %v1241 = vpop.f32.mrf.mxu0
    %v1242 = vadd.f32 %v1117, %v1241
    %v1243 = vpop.f32.mrf.mxu0
    %1244 = vmatprep.mubr.f32.mxu0 %v848
    %1245 = vmatmul.mubr.f32.gmra.mxu0 %v847
    %v1246 = vpop.f32.mrf.mxu0
    %v1247 = vadd.f32 %v1122, %v1246
    %v1248 = vpop.f32.mrf.mxu0
    %1249 = vmatprep.mubr.f32.mxu0 %v856
    %1250 = vmatmul.mubr.f32.gmra.mxu0 %v855
    %v1251 = vpop.f32.mrf.mxu0
    %v1252 = vadd.f32 %v1127, %v1251
    %v1253 = vpop.f32.mrf.mxu0
    %1254 = vmatprep.mubr.f32.mxu0 %v864
    %1255 = vmatmul.mubr.f32.gmra.mxu0 %v863
    %v1256 = vpop.f32.mrf.mxu0
    %v1257 = vadd.f32 %v1132, %v1256
    %v1258 = vpop.f32.mrf.mxu0
    %1259 = vmatprep.mubr.f32.mxu0 %v872
    %1260 = vmatmul.mubr.f32.gmra.mxu0 %v871
    %v1261 = vpop.f32.mrf.mxu0
    %v1262 = vadd.f32 %v1137, %v1261
    %v1263 = vpop.f32.mrf.mxu0
    %1264 = vmatprep.mubr.f32.mxu0 %v880
    %1265 = vmatmul.mubr.f32.gmra.mxu0 %v879
    %v1266 = vpop.f32.mrf.mxu0
    %v1267 = vadd.f32 %v1142, %v1266
    %v1268 = vpop.f32.mrf.mxu0
    %1269 = vdwg.mxu0
    %1270 = vmatprep.subr.mxu0 0.0
    %1271 = vmatpush1.msra.mxu0 %v722
    %1272 = vmatprep.subr.mxu0 0.0
    %1273 = vmatpush1.msra.mxu0 %v721
    %1274 = vmatprep.subr.mxu0 0.0
    %1275 = vmatpush1.msra.mxu0 %v720
    %1276 = vmatprep.subr.mxu0 0.0
    %1277 = vmatpush1.msra.mxu0 %v719
    %1278 = vmatprep.subr.mxu0 0.0
    %1279 = vmatpush1.msra.mxu0 %v718
    %1280 = vmatprep.subr.mxu0 0.0
    %1281 = vmatpush1.msra.mxu0 %v717
    %1282 = vmatprep.subr.mxu0 0.0
    %1283 = vmatpush1.msra.mxu0 %v716
    %1284 = vmatprep.subr.mxu0 0.0
    %1285 = vmatpush1.msra.mxu0 %v715
    %1286 = vmatprep.subr.mxu0 0.0
    %1287 = vmatpush1.msra.mxu0 %v714
    %1288 = vmatprep.subr.mxu0 0.0
    %1289 = vmatpush1.msra.mxu0 %v713
    %1290 = vmatprep.subr.mxu0 0.0
    %1291 = vmatpush1.msra.mxu0 %v712
    %1292 = vmatprep.subr.mxu0 0.0
    %1293 = vmatpush1.msra.mxu0 %v711
    %1294 = vmatprep.subr.mxu0 0.0
    %1295 = vmatpush1.msra.mxu0 %v710
    %1296 = vmatprep.subr.mxu0 0.0
    %1297 = vmatpush1.msra.mxu0 %v709
    %1298 = vmatprep.subr.mxu0 0.0
    %1299 = vmatpush1.msra.mxu0 %v708
    %1300 = vmatprep.subr.mxu0 0.0
    %1301 = vmatpush1.msra.mxu0 %v707
    %1302 = vmatprep.subr.mxu0 0.0
    %1303 = vmatpush2.msra.mxu0 %v738
    %1304 = vmatprep.subr.mxu0 0.0
    %1305 = vmatpush2.msra.mxu0 %v737
    %1306 = vmatprep.subr.mxu0 0.0
    %1307 = vmatpush2.msra.mxu0 %v736
    %1308 = vmatprep.subr.mxu0 0.0
    %1309 = vmatpush2.msra.mxu0 %v735
    %1310 = vmatprep.subr.mxu0 0.0
    %1311 = vmatpush2.msra.mxu0 %v734
    %1312 = vmatprep.subr.mxu0 0.0
    %1313 = vmatpush2.msra.mxu0 %v733
    %1314 = vmatprep.subr.mxu0 0.0
    %1315 = vmatpush2.msra.mxu0 %v732
    %1316 = vmatprep.subr.mxu0 0.0
    %1317 = vmatpush2.msra.mxu0 %v731
    %1318 = vmatprep.subr.mxu0 0.0
    %1319 = vmatpush2.msra.mxu0 %v730
    %1320 = vmatprep.subr.mxu0 0.0
    %1321 = vmatpush2.msra.mxu0 %v729
    %1322 = vmatprep.subr.mxu0 0.0
    %1323 = vmatpush2.msra.mxu0 %v728
    %1324 = vmatprep.subr.mxu0 0.0
    %1325 = vmatpush2.msra.mxu0 %v727
    %1326 = vmatprep.subr.mxu0 0.0
    %1327 = vmatpush2.msra.mxu0 %v726
    %1328 = vmatprep.subr.mxu0 0.0
    %1329 = vmatpush2.msra.mxu0 %v725
    %1330 = vmatprep.subr.mxu0 0.0
    %1331 = vmatpush2.msra.mxu0 %v724
    %1332 = vmatprep.subr.mxu0 0.0
    %1333 = vmatpush2.msra.mxu0 %v723
    %1334 = vmatprep.mubr.f32.mxu0 %v794
    %1335 = vmatmul.mubr.f32.gmra.mxu0 %v793
    %v1336 = vpop.f32.mrf.mxu0
    %v1337 = vadd.f32 %v1212, %v1336
    %v1338 = vpop.f32.mrf.mxu0
    %1339 = vmatprep.mubr.f32.mxu0 %v802
    %1340 = vmatmul.mubr.f32.gmra.mxu0 %v801
    %v1341 = vpop.f32.mrf.mxu0
    %v1342 = vadd.f32 %v1217, %v1341
    %v1343 = vpop.f32.mrf.mxu0
    %1344 = vmatprep.mubr.f32.mxu0 %v810
    %1345 = vmatmul.mubr.f32.gmra.mxu0 %v809
    %v1346 = vpop.f32.mrf.mxu0
    %v1347 = vadd.f32 %v1222, %v1346
    %v1348 = vpop.f32.mrf.mxu0
    %1349 = vmatprep.mubr.f32.mxu0 %v818
    %1350 = vmatmul.mubr.f32.gmra.mxu0 %v817
    %v1351 = vpop.f32.mrf.mxu0
    %v1352 = vadd.f32 %v1227, %v1351
    %v1353 = vpop.f32.mrf.mxu0
    %1354 = vmatprep.mubr.f32.mxu0 %v826
    %1355 = vmatmul.mubr.f32.gmra.mxu0 %v825
    %v1356 = vpop.f32.mrf.mxu0
    %v1357 = vadd.f32 %v1232, %v1356
    %v1358 = vpop.f32.mrf.mxu0
    %1359 = vmatprep.mubr.f32.mxu0 %v834
    %1360 = vmatmul.mubr.f32.gmra.mxu0 %v833
    %v1361 = vpop.f32.mrf.mxu0
    %v1362 = vadd.f32 %v1237, %v1361
    %v1363 = vpop.f32.mrf.mxu0
    %1364 = vmatprep.mubr.f32.mxu0 %v842
    %1365 = vmatmul.mubr.f32.gmra.mxu0 %v841
    %v1366 = vpop.f32.mrf.mxu0
    %v1367 = vadd.f32 %v1242, %v1366
    %v1368 = vpop.f32.mrf.mxu0
    %1369 = vmatprep.mubr.f32.mxu0 %v850
    %1370 = vmatmul.mubr.f32.gmra.mxu0 %v849
    %v1371 = vpop.f32.mrf.mxu0
    %v1372 = vadd.f32 %v1247, %v1371
    %v1373 = vpop.f32.mrf.mxu0
    %1374 = vmatprep.mubr.f32.mxu0 %v858
    %1375 = vmatmul.mubr.f32.gmra.mxu0 %v857
    %v1376 = vpop.f32.mrf.mxu0
    %v1377 = vadd.f32 %v1252, %v1376
    %v1378 = vpop.f32.mrf.mxu0
    %1379 = vmatprep.mubr.f32.mxu0 %v866
    %1380 = vmatmul.mubr.f32.gmra.mxu0 %v865
    %v1381 = vpop.f32.mrf.mxu0
    %v1382 = vadd.f32 %v1257, %v1381
    %v1383 = vpop.f32.mrf.mxu0
    %1384 = vmatprep.mubr.f32.mxu0 %v874
    %1385 = vmatmul.mubr.f32.gmra.mxu0 %v873
    %v1386 = vpop.f32.mrf.mxu0
    %v1387 = vadd.f32 %v1262, %v1386
    %v1388 = vpop.f32.mrf.mxu0
    %1389 = vmatprep.mubr.f32.mxu0 %v882
    %1390 = vmatmul.mubr.f32.gmra.mxu0 %v881
    %v1391 = vpop.f32.mrf.mxu0
    %v1392 = vadd.f32 %v1267, %v1391
    %v1393 = vpop.f32.mrf.mxu0
    %1394 = vdwg.mxu0
    %v1395 = vxor.u32 %v1337, 2147483648
    %v1396 = vxor.u32 %v1342, 2147483648
    %v1397 = vxor.u32 %v1347, 2147483648
    %v1398 = vxor.u32 %v1352, 2147483648
    %v1399 = vxor.u32 %v1357, 2147483648
    %v1400 = vxor.u32 %v1362, 2147483648
    %v1401 = vxor.u32 %v1367, 2147483648
    %v1402 = vxor.u32 %v1372, 2147483648
    %v1403 = vxor.u32 %v1377, 2147483648
    %v1404 = vxor.u32 %v1382, 2147483648
    %v1405 = vxor.u32 %v1387, 2147483648
    %v1406 = vxor.u32 %v1392, 2147483648
    %v1407 = vmul.f32 %v1395, 1.442695
    %v1408 = vpow.pop %v1407
    %v1409 = vmul.f32 %v1396, 1.442695
    %v1410 = vpow.pop %v1409
    %v1411 = vmul.f32 %v1397, 1.442695
    %v1412 = vpow.pop %v1411
    %v1413 = vmul.f32 %v1398, 1.442695
    %v1414 = vpow.pop %v1413
    %v1415 = vmul.f32 %v1399, 1.442695
    %v1416 = vpow.pop %v1415
    %v1417 = vmul.f32 %v1400, 1.442695
    %v1418 = vpow.pop %v1417
    %v1419 = vmul.f32 %v1401, 1.442695
    %v1420 = vpow.pop %v1419
    %v1421 = vmul.f32 %v1402, 1.442695
    %v1422 = vpow.pop %v1421
    %v1423 = vmul.f32 %v1403, 1.442695
    %v1424 = vpow.pop %v1423
    %v1425 = vmul.f32 %v1404, 1.442695
    %v1426 = vpow.pop %v1425
    %v1427 = vmul.f32 %v1405, 1.442695
    %v1428 = vpow.pop %v1427
    %v1429 = vmul.f32 %v1406, 1.442695
    %v1430 = vpow.pop %v1429
    %v1431 = vadd.f32 %v1408, 1.0
    %v1432 = vadd.f32 %v1410, 1.0
    %v1433 = vadd.f32 %v1412, 1.0
    %v1434 = vadd.f32 %v1414, 1.0
    %v1435 = vadd.f32 %v1416, 1.0
    %v1436 = vadd.f32 %v1418, 1.0
    %v1437 = vadd.f32 %v1420, 1.0
    %v1438 = vadd.f32 %v1422, 1.0
    %v1439 = vadd.f32 %v1424, 1.0
    %v1440 = vadd.f32 %v1426, 1.0
    %v1441 = vadd.f32 %v1428, 1.0
    %v1442 = vadd.f32 %v1430, 1.0
    %v1443 = vrcp.pop %v1431
    %v1444 = vmul.f32 1.0, %v1443
    %v1445 = vrcp.pop %v1432
    %v1446 = vmul.f32 1.0, %v1445
    %v1447 = vrcp.pop %v1433
    %v1448 = vmul.f32 1.0, %v1447
    %v1449 = vrcp.pop %v1434
    %v1450 = vmul.f32 1.0, %v1449
    %v1451 = vrcp.pop %v1435
    %v1452 = vmul.f32 1.0, %v1451
    %v1453 = vrcp.pop %v1436
    %v1454 = vmul.f32 1.0, %v1453
    %v1455 = vrcp.pop %v1437
    %v1456 = vmul.f32 1.0, %v1455
    %v1457 = vrcp.pop %v1438
    %v1458 = vmul.f32 1.0, %v1457
    %v1459 = vrcp.pop %v1439
    %v1460 = vmul.f32 1.0, %v1459
    %v1461 = vrcp.pop %v1440
    %v1462 = vmul.f32 1.0, %v1461
    %v1463 = vrcp.pop %v1441
    %v1464 = vmul.f32 1.0, %v1463
    %v1465 = vrcp.pop %v1442
    %v1466 = vmul.f32 1.0, %v1465
    %v1467 = vadd.s32 %v184, 128
    %v1468 = vadd.s32 %v184, 256
    %v1469 = vadd.s32 %v184, 384
    %v1470 = vadd.s32 %v184, 512
    %v1471 = vadd.s32 %v184, 640
    %v1472 = vadd.s32 %v184, 768
    %v1473 = vmul.u32 %v55, 49
    %v1474 = vmul.u32 %v56, 49
    %vm1475 = vcmp.ge.s32.totalorder %v184, %v1473
    %vm1476 = vcmp.ge.s32.totalorder %v1467, %v1473
    %vm1477 = vcmp.ge.s32.totalorder %v1468, %v1473
    %vm1478 = vcmp.ge.s32.totalorder %v1469, %v1473
    %vm1479 = vcmp.ge.s32.totalorder %v1470, %v1473
    %vm1480 = vcmp.ge.s32.totalorder %v1471, %v1473
    %vm1481 = vcmp.ge.s32.totalorder %v1472, %v1473
    %vm1482 = vcmp.ge.s32.totalorder %v184, %v1474
    %vm1483 = vcmp.ge.s32.totalorder %v1467, %v1474
    %vm1484 = vcmp.ge.s32.totalorder %v1468, %v1474
    %vm1485 = vcmp.ge.s32.totalorder %v1469, %v1474
    %vm1486 = vcmp.ge.s32.totalorder %v1470, %v1474
    %vm1487 = vcmp.ge.s32.totalorder %v1471, %v1474
    %vm1488 = vcmp.ge.s32.totalorder %v1472, %v1474
    %v1489 = vadd.s32 %v1473, 49
    %v1490 = vadd.s32 %v1474, 49
    %vm1491 = vcmp.lt.s32.totalorder %v184, %v1489
    %vm1492 = vcmp.lt.s32.totalorder %v1467, %v1489
    %vm1493 = vcmp.lt.s32.totalorder %v1468, %v1489
    %vm1494 = vcmp.lt.s32.totalorder %v1469, %v1489
    %vm1495 = vcmp.lt.s32.totalorder %v1470, %v1489
    %vm1496 = vcmp.lt.s32.totalorder %v1471, %v1489
    %vm1497 = vcmp.lt.s32.totalorder %v1472, %v1489
    %vm1498 = vcmp.lt.s32.totalorder %v184, %v1490
    %vm1499 = vcmp.lt.s32.totalorder %v1467, %v1490
    %vm1500 = vcmp.lt.s32.totalorder %v1468, %v1490
    %vm1501 = vcmp.lt.s32.totalorder %v1469, %v1490
    %vm1502 = vcmp.lt.s32.totalorder %v1470, %v1490
    %vm1503 = vcmp.lt.s32.totalorder %v1471, %v1490
    %vm1504 = vcmp.lt.s32.totalorder %v1472, %v1490
    %vm1505 = vmand %vm1475, %vm1491
    %vm1506 = vmand %vm1476, %vm1492
    %vm1507 = vmand %vm1477, %vm1493
    %vm1508 = vmand %vm1478, %vm1494
    %vm1509 = vmand %vm1479, %vm1495
    %vm1510 = vmand %vm1480, %vm1496
    %vm1511 = vmand %vm1481, %vm1497
    %vm1512 = vmand %vm1482, %vm1498
    %vm1513 = vmand %vm1483, %vm1499
    %vm1514 = vmand %vm1484, %vm1500
    %vm1515 = vmand %vm1485, %vm1501
    %vm1516 = vmand %vm1486, %vm1502
    %vm1517 = vmand %vm1487, %vm1503
    %vm1518 = vmand %vm1488, %vm1504
    %v1519 = vsel %vm1505, 1, 0
    %v1520 = vsel %vm1506, 1, 0
    %v1521 = vsel %vm1507, 1, 0
    %v1522 = vsel %vm1508, 1, 0
    %v1523 = vsel %vm1509, 1, 0
    %v1524 = vsel %vm1510, 1, 0
    %v1525 = vsel %vm1511, 1, 0
    %v1526 = vsel %vm1512, 1, 0
    %v1527 = vsel %vm1513, 1, 0
    %v1528 = vsel %vm1514, 1, 0
    %v1529 = vsel %vm1515, 1, 0
    %v1530 = vsel %vm1516, 1, 0
    %v1531 = vsel %vm1517, 1, 0
    %v1532 = vsel %vm1518, 1, 0
    %v1533 = vcvt.s32.f32 %v1519
    %v1534 = vcvt.s32.f32 %v1520
    %v1535 = vcvt.s32.f32 %v1521
    %v1536 = vcvt.s32.f32 %v1522
    %v1537 = vcvt.s32.f32 %v1523
    %v1538 = vcvt.s32.f32 %v1524
    %v1539 = vcvt.s32.f32 %v1525
    %v1540 = vcvt.s32.f32 %v1526
    %v1541 = vcvt.s32.f32 %v1527
    %v1542 = vcvt.s32.f32 %v1528
    %v1543 = vcvt.s32.f32 %v1529
    %v1544 = vcvt.s32.f32 %v1530
    %v1545 = vcvt.s32.f32 %v1531
    %v1546 = vcvt.s32.f32 %v1532
    %vm1547 = vcmask 130048
    %v1549 = vsel %vm1547, %v1444, 0
    %v1552 = vsel %vm1547, %v1446, 0
    %v1555 = vsel %vm1547, %v1448, 0
    %v1558 = vsel %vm1547, %v1450, 0
    %v1561 = vsel %vm1547, %v1452, 0
    %v1564 = vsel %vm1547, %v1454, 0
    %v1567 = vsel %vm1547, %v1456, 0
    %v1570 = vsel %vm1547, %v1458, 0
    %v1573 = vsel %vm1547, %v1460, 0
    %v1576 = vsel %vm1547, %v1462, 0
    %v1579 = vsel %vm1547, %v1464, 0
    %v1582 = vsel %vm1547, %v1466, 0
    %1584 = vmatprep.subr.mxu0 0.0
    %1585 = vmatpush1.msra.mxu0 0.0
    %1586 = vmatprep.subr.mxu0 0.0
    %1587 = vmatpush1.msra.mxu0 0.0
    %1588 = vmatprep.subr.mxu0 0.0
    %1589 = vmatpush1.msra.mxu0 0.0
    %1590 = vmatprep.subr.mxu0 0.0
    %1591 = vmatpush1.msra.mxu0 0.0
    %1592 = vmatprep.subr.mxu0 0.0
    %1593 = vmatpush1.msra.mxu0 0.0
    %1594 = vmatprep.subr.mxu0 0.0
    %1595 = vmatpush1.msra.mxu0 0.0
    %1596 = vmatprep.subr.mxu0 0.0
    %1597 = vmatpush1.msra.mxu0 0.0
    %1598 = vmatprep.subr.mxu0 0.0
    %1599 = vmatpush1.msra.mxu0 0.0
    %1600 = vmatprep.subr.mxu0 0.0
    %1601 = vmatpush1.msra.mxu0 0.0
    %1602 = vmatprep.subr.mxu0 0.0
    %1603 = vmatpush1.msra.mxu0 0.0
    %1604 = vmatprep.subr.mxu0 0.0
    %1605 = vmatpush1.msra.mxu0 0.0
    %1606 = vmatprep.subr.mxu0 0.0
    %1607 = vmatpush1.msra.mxu0 0.0
    %1608 = vmatprep.subr.mxu0 0.0
    %1609 = vmatpush1.msra.mxu0 0.0
    %1610 = vmatprep.subr.mxu0 0.0
    %1611 = vmatpush1.msra.mxu0 0.0
    %1612 = vmatprep.subr.mxu0 %v1541
    %1613 = vmatpush1.msra.mxu0 %v1540
    %1614 = vmatprep.subr.mxu0 %v1534
    %1615 = vmatpush1.msra.mxu0 %v1533
    %1616 = vmatprep.subr.mxu0 0.0
    %1617 = vmatpush2.msra.mxu0 0.0
    %1618 = vmatprep.subr.mxu0 0.0
    %1619 = vmatpush2.msra.mxu0 0.0
    %1620 = vmatprep.subr.mxu0 0.0
    %1621 = vmatpush2.msra.mxu0 0.0
    %1622 = vmatprep.subr.mxu0 0.0
    %1623 = vmatpush2.msra.mxu0 0.0
    %1624 = vmatprep.subr.mxu0 0.0
    %1625 = vmatpush2.msra.mxu0 0.0
    %1626 = vmatprep.subr.mxu0 0.0
    %1627 = vmatpush2.msra.mxu0 0.0
    %1628 = vmatprep.subr.mxu0 0.0
    %1629 = vmatpush2.msra.mxu0 0.0
    %1630 = vmatprep.subr.mxu0 0.0
    %1631 = vmatpush2.msra.mxu0 0.0
    %1632 = vmatprep.subr.mxu0 0.0
    %1633 = vmatpush2.msra.mxu0 0.0
    %1634 = vmatprep.subr.mxu0 0.0
    %1635 = vmatpush2.msra.mxu0 0.0
    %1636 = vmatprep.subr.mxu0 0.0
    %1637 = vmatpush2.msra.mxu0 0.0
    %1638 = vmatprep.subr.mxu0 0.0
    %1639 = vmatpush2.msra.mxu0 0.0
    %1640 = vmatprep.subr.mxu0 0.0
    %1641 = vmatpush2.msra.mxu0 0.0
    %1642 = vmatprep.subr.mxu0 0.0
    %1643 = vmatpush2.msra.mxu0 0.0
    %1644 = vmatprep.subr.mxu0 0.0
    %1645 = vmatpush2.msra.mxu0 0.0
    %1646 = vmatprep.subr.mxu0 0.0
    %1647 = vmatpush2.msra.mxu0 0.0
    %1648 = vmatprep.mubr.f32.mxu0 0.0
    %1649 = vmatmul.mubr.f32.gmra.mxu0 %v1549
    %v1650 = vpop.f32.mrf.mxu0
    %v1651 = vadd.f32 0.0, %v1650
    %v1652 = vpop.f32.mrf.mxu0
    %v1653 = vadd.f32 0.0, %v1652
    %1654 = vmatprep.mubr.f32.mxu0 0.0
    %1655 = vmatmul.mubr.f32.gmra.mxu0 %v1552
    %v1656 = vpop.f32.mrf.mxu0
    %v1657 = vadd.f32 0.0, %v1656
    %v1658 = vpop.f32.mrf.mxu0
    %v1659 = vadd.f32 0.0, %v1658
    %1660 = vmatprep.mubr.f32.mxu0 0.0
    %1661 = vmatmul.mubr.f32.gmra.mxu0 %v1555
    %v1662 = vpop.f32.mrf.mxu0
    %v1663 = vadd.f32 0.0, %v1662
    %v1664 = vpop.f32.mrf.mxu0
    %v1665 = vadd.f32 0.0, %v1664
    %1666 = vmatprep.mubr.f32.mxu0 0.0
    %1667 = vmatmul.mubr.f32.gmra.mxu0 %v1558
    %v1668 = vpop.f32.mrf.mxu0
    %v1669 = vadd.f32 0.0, %v1668
    %v1670 = vpop.f32.mrf.mxu0
    %v1671 = vadd.f32 0.0, %v1670
    %1672 = vmatprep.mubr.f32.mxu0 0.0
    %1673 = vmatmul.mubr.f32.gmra.mxu0 %v1561
    %v1674 = vpop.f32.mrf.mxu0
    %v1675 = vadd.f32 0.0, %v1674
    %v1676 = vpop.f32.mrf.mxu0
    %v1677 = vadd.f32 0.0, %v1676
    %1678 = vmatprep.mubr.f32.mxu0 0.0
    %1679 = vmatmul.mubr.f32.gmra.mxu0 %v1564
    %v1680 = vpop.f32.mrf.mxu0
    %v1681 = vadd.f32 0.0, %v1680
    %v1682 = vpop.f32.mrf.mxu0
    %v1683 = vadd.f32 0.0, %v1682
    %1684 = vmatprep.mubr.f32.mxu0 0.0
    %1685 = vmatmul.mubr.f32.gmra.mxu0 %v1567
    %v1686 = vpop.f32.mrf.mxu0
    %v1687 = vadd.f32 0.0, %v1686
    %v1688 = vpop.f32.mrf.mxu0
    %v1689 = vadd.f32 0.0, %v1688
    %1690 = vmatprep.mubr.f32.mxu0 0.0
    %1691 = vmatmul.mubr.f32.gmra.mxu0 %v1570
    %v1692 = vpop.f32.mrf.mxu0
    %v1693 = vadd.f32 0.0, %v1692
    %v1694 = vpop.f32.mrf.mxu0
    %v1695 = vadd.f32 0.0, %v1694
    %1696 = vmatprep.mubr.f32.mxu0 0.0
    %1697 = vmatmul.mubr.f32.gmra.mxu0 %v1573
    %v1698 = vpop.f32.mrf.mxu0
    %v1699 = vadd.f32 0.0, %v1698
    %v1700 = vpop.f32.mrf.mxu0
    %v1701 = vadd.f32 0.0, %v1700
    %1702 = vmatprep.mubr.f32.mxu0 0.0
    %1703 = vmatmul.mubr.f32.gmra.mxu0 %v1576
    %v1704 = vpop.f32.mrf.mxu0
    %v1705 = vadd.f32 0.0, %v1704
    %v1706 = vpop.f32.mrf.mxu0
    %v1707 = vadd.f32 0.0, %v1706
    %1708 = vmatprep.mubr.f32.mxu0 0.0
    %1709 = vmatmul.mubr.f32.gmra.mxu0 %v1579
    %v1710 = vpop.f32.mrf.mxu0
    %v1711 = vadd.f32 0.0, %v1710
    %v1712 = vpop.f32.mrf.mxu0
    %v1713 = vadd.f32 0.0, %v1712
    %1714 = vmatprep.mubr.f32.mxu0 0.0
    %1715 = vmatmul.mubr.f32.gmra.mxu0 %v1582
    %v1716 = vpop.f32.mrf.mxu0
    %v1717 = vadd.f32 0.0, %v1716
    %v1718 = vpop.f32.mrf.mxu0
    %v1719 = vadd.f32 0.0, %v1718
    %1720 = vdwg.mxu0
    %1721 = vmatprep.subr.mxu0 0.0
    %1722 = vmatpush1.msra.mxu0 0.0
    %1723 = vmatprep.subr.mxu0 0.0
    %1724 = vmatpush1.msra.mxu0 0.0
    %1725 = vmatprep.subr.mxu0 0.0
    %1726 = vmatpush1.msra.mxu0 0.0
    %1727 = vmatprep.subr.mxu0 0.0
    %1728 = vmatpush1.msra.mxu0 0.0
    %1729 = vmatprep.subr.mxu0 0.0
    %1730 = vmatpush1.msra.mxu0 0.0
    %1731 = vmatprep.subr.mxu0 0.0
    %1732 = vmatpush1.msra.mxu0 0.0
    %1733 = vmatprep.subr.mxu0 0.0
    %1734 = vmatpush1.msra.mxu0 0.0
    %1735 = vmatprep.subr.mxu0 0.0
    %1736 = vmatpush1.msra.mxu0 0.0
    %1737 = vmatprep.subr.mxu0 0.0
    %1738 = vmatpush1.msra.mxu0 0.0
    %1739 = vmatprep.subr.mxu0 0.0
    %1740 = vmatpush1.msra.mxu0 0.0
    %1741 = vmatprep.subr.mxu0 0.0
    %1742 = vmatpush1.msra.mxu0 0.0
    %1743 = vmatprep.subr.mxu0 0.0
    %1744 = vmatpush1.msra.mxu0 0.0
    %1745 = vmatprep.subr.mxu0 0.0
    %1746 = vmatpush1.msra.mxu0 0.0
    %1747 = vmatprep.subr.mxu0 0.0
    %1748 = vmatpush1.msra.mxu0 0.0
    %1749 = vmatprep.subr.mxu0 %v1543
    %1750 = vmatpush1.msra.mxu0 %v1542
    %1751 = vmatprep.subr.mxu0 %v1536
    %1752 = vmatpush1.msra.mxu0 %v1535
    %1753 = vmatprep.subr.mxu0 0.0
    %1754 = vmatpush2.msra.mxu0 0.0
    %1755 = vmatprep.subr.mxu0 0.0
    %1756 = vmatpush2.msra.mxu0 0.0
    %1757 = vmatprep.subr.mxu0 0.0
    %1758 = vmatpush2.msra.mxu0 0.0
    %1759 = vmatprep.subr.mxu0 0.0
    %1760 = vmatpush2.msra.mxu0 0.0
    %1761 = vmatprep.subr.mxu0 0.0
    %1762 = vmatpush2.msra.mxu0 0.0
    %1763 = vmatprep.subr.mxu0 0.0
    %1764 = vmatpush2.msra.mxu0 0.0
    %1765 = vmatprep.subr.mxu0 0.0
    %1766 = vmatpush2.msra.mxu0 0.0
    %1767 = vmatprep.subr.mxu0 0.0
    %1768 = vmatpush2.msra.mxu0 0.0
    %1769 = vmatprep.subr.mxu0 0.0
    %1770 = vmatpush2.msra.mxu0 0.0
    %1771 = vmatprep.subr.mxu0 0.0
    %1772 = vmatpush2.msra.mxu0 0.0
    %1773 = vmatprep.subr.mxu0 0.0
    %1774 = vmatpush2.msra.mxu0 0.0
    %1775 = vmatprep.subr.mxu0 0.0
    %1776 = vmatpush2.msra.mxu0 0.0
    %1777 = vmatprep.subr.mxu0 0.0
    %1778 = vmatpush2.msra.mxu0 0.0
    %1779 = vmatprep.subr.mxu0 0.0
    %1780 = vmatpush2.msra.mxu0 0.0
    %1781 = vmatprep.subr.mxu0 0.0
    %1782 = vmatpush2.msra.mxu0 0.0
    %1783 = vmatprep.subr.mxu0 0.0
    %1784 = vmatpush2.msra.mxu0 0.0
    %1785 = vmatprep.mubr.f32.mxu0 0.0
    %1786 = vmatmul.mubr.f32.gmra.mxu0 %v1549
    %v1787 = vpop.f32.mrf.mxu0
    %v1788 = vadd.f32 0.0, %v1787
    %v1789 = vpop.f32.mrf.mxu0
    %v1790 = vadd.f32 0.0, %v1789
    %1791 = vmatprep.mubr.f32.mxu0 0.0
    %1792 = vmatmul.mubr.f32.gmra.mxu0 %v1552
    %v1793 = vpop.f32.mrf.mxu0
    %v1794 = vadd.f32 0.0, %v1793
    %v1795 = vpop.f32.mrf.mxu0
    %v1796 = vadd.f32 0.0, %v1795
    %1797 = vmatprep.mubr.f32.mxu0 0.0
    %1798 = vmatmul.mubr.f32.gmra.mxu0 %v1555
    %v1799 = vpop.f32.mrf.mxu0
    %v1800 = vadd.f32 0.0, %v1799
    %v1801 = vpop.f32.mrf.mxu0
    %v1802 = vadd.f32 0.0, %v1801
    %1803 = vmatprep.mubr.f32.mxu0 0.0
    %1804 = vmatmul.mubr.f32.gmra.mxu0 %v1558
    %v1805 = vpop.f32.mrf.mxu0
    %v1806 = vadd.f32 0.0, %v1805
    %v1807 = vpop.f32.mrf.mxu0
    %v1808 = vadd.f32 0.0, %v1807
    %1809 = vmatprep.mubr.f32.mxu0 0.0
    %1810 = vmatmul.mubr.f32.gmra.mxu0 %v1561
    %v1811 = vpop.f32.mrf.mxu0
    %v1812 = vadd.f32 0.0, %v1811
    %v1813 = vpop.f32.mrf.mxu0
    %v1814 = vadd.f32 0.0, %v1813
    %1815 = vmatprep.mubr.f32.mxu0 0.0
    %1816 = vmatmul.mubr.f32.gmra.mxu0 %v1564
    %v1817 = vpop.f32.mrf.mxu0
    %v1818 = vadd.f32 0.0, %v1817
    %v1819 = vpop.f32.mrf.mxu0
    %v1820 = vadd.f32 0.0, %v1819
    %1821 = vmatprep.mubr.f32.mxu0 0.0
    %1822 = vmatmul.mubr.f32.gmra.mxu0 %v1567
    %v1823 = vpop.f32.mrf.mxu0
    %v1824 = vadd.f32 0.0, %v1823
    %v1825 = vpop.f32.mrf.mxu0
    %v1826 = vadd.f32 0.0, %v1825
    %1827 = vmatprep.mubr.f32.mxu0 0.0
    %1828 = vmatmul.mubr.f32.gmra.mxu0 %v1570
    %v1829 = vpop.f32.mrf.mxu0
    %v1830 = vadd.f32 0.0, %v1829
    %v1831 = vpop.f32.mrf.mxu0
    %v1832 = vadd.f32 0.0, %v1831
    %1833 = vmatprep.mubr.f32.mxu0 0.0
    %1834 = vmatmul.mubr.f32.gmra.mxu0 %v1573
    %v1835 = vpop.f32.mrf.mxu0
    %v1836 = vadd.f32 0.0, %v1835
    %v1837 = vpop.f32.mrf.mxu0
    %v1838 = vadd.f32 0.0, %v1837
    %1839 = vmatprep.mubr.f32.mxu0 0.0
    %1840 = vmatmul.mubr.f32.gmra.mxu0 %v1576
    %v1841 = vpop.f32.mrf.mxu0
    %v1842 = vadd.f32 0.0, %v1841
    %v1843 = vpop.f32.mrf.mxu0
    %v1844 = vadd.f32 0.0, %v1843
    %1845 = vmatprep.mubr.f32.mxu0 0.0
    %1846 = vmatmul.mubr.f32.gmra.mxu0 %v1579
    %v1847 = vpop.f32.mrf.mxu0
    %v1848 = vadd.f32 0.0, %v1847
    %v1849 = vpop.f32.mrf.mxu0
    %v1850 = vadd.f32 0.0, %v1849
    %1851 = vmatprep.mubr.f32.mxu0 0.0
    %1852 = vmatmul.mubr.f32.gmra.mxu0 %v1582
    %v1853 = vpop.f32.mrf.mxu0
    %v1854 = vadd.f32 0.0, %v1853
    %v1855 = vpop.f32.mrf.mxu0
    %v1856 = vadd.f32 0.0, %v1855
    %1857 = vdwg.mxu0
    %1858 = vmatprep.subr.mxu0 0.0
    %1859 = vmatpush1.msra.mxu0 0.0
    %1860 = vmatprep.subr.mxu0 0.0
    %1861 = vmatpush1.msra.mxu0 0.0
    %1862 = vmatprep.subr.mxu0 0.0
    %1863 = vmatpush1.msra.mxu0 0.0
    %1864 = vmatprep.subr.mxu0 0.0
    %1865 = vmatpush1.msra.mxu0 0.0
    %1866 = vmatprep.subr.mxu0 0.0
    %1867 = vmatpush1.msra.mxu0 0.0
    %1868 = vmatprep.subr.mxu0 0.0
    %1869 = vmatpush1.msra.mxu0 0.0
    %1870 = vmatprep.subr.mxu0 0.0
    %1871 = vmatpush1.msra.mxu0 0.0
    %1872 = vmatprep.subr.mxu0 0.0
    %1873 = vmatpush1.msra.mxu0 0.0
    %1874 = vmatprep.subr.mxu0 0.0
    %1875 = vmatpush1.msra.mxu0 0.0
    %1876 = vmatprep.subr.mxu0 0.0
    %1877 = vmatpush1.msra.mxu0 0.0
    %1878 = vmatprep.subr.mxu0 0.0
    %1879 = vmatpush1.msra.mxu0 0.0
    %1880 = vmatprep.subr.mxu0 0.0
    %1881 = vmatpush1.msra.mxu0 0.0
    %1882 = vmatprep.subr.mxu0 0.0
    %1883 = vmatpush1.msra.mxu0 0.0
    %1884 = vmatprep.subr.mxu0 0.0
    %1885 = vmatpush1.msra.mxu0 0.0
    %1886 = vmatprep.subr.mxu0 %v1545
    %1887 = vmatpush1.msra.mxu0 %v1544
    %1888 = vmatprep.subr.mxu0 %v1538
    %1889 = vmatpush1.msra.mxu0 %v1537
    %1890 = vmatprep.subr.mxu0 0.0
    %1891 = vmatpush2.msra.mxu0 0.0
    %1892 = vmatprep.subr.mxu0 0.0
    %1893 = vmatpush2.msra.mxu0 0.0
    %1894 = vmatprep.subr.mxu0 0.0
    %1895 = vmatpush2.msra.mxu0 0.0
    %1896 = vmatprep.subr.mxu0 0.0
    %1897 = vmatpush2.msra.mxu0 0.0
    %1898 = vmatprep.subr.mxu0 0.0
    %1899 = vmatpush2.msra.mxu0 0.0
    %1900 = vmatprep.subr.mxu0 0.0
    %1901 = vmatpush2.msra.mxu0 0.0
    %1902 = vmatprep.subr.mxu0 0.0
    %1903 = vmatpush2.msra.mxu0 0.0
    %1904 = vmatprep.subr.mxu0 0.0
    %1905 = vmatpush2.msra.mxu0 0.0
    %1906 = vmatprep.subr.mxu0 0.0
    %1907 = vmatpush2.msra.mxu0 0.0
    %1908 = vmatprep.subr.mxu0 0.0
    %1909 = vmatpush2.msra.mxu0 0.0
    %1910 = vmatprep.subr.mxu0 0.0
    %1911 = vmatpush2.msra.mxu0 0.0
    %1912 = vmatprep.subr.mxu0 0.0
    %1913 = vmatpush2.msra.mxu0 0.0
    %1914 = vmatprep.subr.mxu0 0.0
    %1915 = vmatpush2.msra.mxu0 0.0
    %1916 = vmatprep.subr.mxu0 0.0
    %1917 = vmatpush2.msra.mxu0 0.0
    %1918 = vmatprep.subr.mxu0 0.0
    %1919 = vmatpush2.msra.mxu0 0.0
    %1920 = vmatprep.subr.mxu0 0.0
    %1921 = vmatpush2.msra.mxu0 0.0
    %1922 = vmatprep.mubr.f32.mxu0 0.0
    %1923 = vmatmul.mubr.f32.gmra.mxu0 %v1549
    %v1924 = vpop.f32.mrf.mxu0
    %v1925 = vadd.f32 0.0, %v1924
    %v1926 = vpop.f32.mrf.mxu0
    %v1927 = vadd.f32 0.0, %v1926
    %1928 = vmatprep.mubr.f32.mxu0 0.0
    %1929 = vmatmul.mubr.f32.gmra.mxu0 %v1552
    %v1930 = vpop.f32.mrf.mxu0
    %v1931 = vadd.f32 0.0, %v1930
    %v1932 = vpop.f32.mrf.mxu0
    %v1933 = vadd.f32 0.0, %v1932
    %1934 = vmatprep.mubr.f32.mxu0 0.0
    %1935 = vmatmul.mubr.f32.gmra.mxu0 %v1555
    %v1936 = vpop.f32.mrf.mxu0
    %v1937 = vadd.f32 0.0, %v1936
    %v1938 = vpop.f32.mrf.mxu0
    %v1939 = vadd.f32 0.0, %v1938
    %1940 = vmatprep.mubr.f32.mxu0 0.0
    %1941 = vmatmul.mubr.f32.gmra.mxu0 %v1558
    %v1942 = vpop.f32.mrf.mxu0
    %v1943 = vadd.f32 0.0, %v1942
    %v1944 = vpop.f32.mrf.mxu0
    %v1945 = vadd.f32 0.0, %v1944
    %1946 = vmatprep.mubr.f32.mxu0 0.0
    %1947 = vmatmul.mubr.f32.gmra.mxu0 %v1561
    %v1948 = vpop.f32.mrf.mxu0
    %v1949 = vadd.f32 0.0, %v1948
    %v1950 = vpop.f32.mrf.mxu0
    %v1951 = vadd.f32 0.0, %v1950
    %1952 = vmatprep.mubr.f32.mxu0 0.0
    %1953 = vmatmul.mubr.f32.gmra.mxu0 %v1564
    %v1954 = vpop.f32.mrf.mxu0
    %v1955 = vadd.f32 0.0, %v1954
    %v1956 = vpop.f32.mrf.mxu0
    %v1957 = vadd.f32 0.0, %v1956
    %1958 = vmatprep.mubr.f32.mxu0 0.0
    %1959 = vmatmul.mubr.f32.gmra.mxu0 %v1567
    %v1960 = vpop.f32.mrf.mxu0
    %v1961 = vadd.f32 0.0, %v1960
    %v1962 = vpop.f32.mrf.mxu0
    %v1963 = vadd.f32 0.0, %v1962
    %1964 = vmatprep.mubr.f32.mxu0 0.0
    %1965 = vmatmul.mubr.f32.gmra.mxu0 %v1570
    %v1966 = vpop.f32.mrf.mxu0
    %v1967 = vadd.f32 0.0, %v1966
    %v1968 = vpop.f32.mrf.mxu0
    %v1969 = vadd.f32 0.0, %v1968
    %1970 = vmatprep.mubr.f32.mxu0 0.0
    %1971 = vmatmul.mubr.f32.gmra.mxu0 %v1573
    %v1972 = vpop.f32.mrf.mxu0
    %v1973 = vadd.f32 0.0, %v1972
    %v1974 = vpop.f32.mrf.mxu0
    %v1975 = vadd.f32 0.0, %v1974
    %1976 = vmatprep.mubr.f32.mxu0 0.0
    %1977 = vmatmul.mubr.f32.gmra.mxu0 %v1576
    %v1978 = vpop.f32.mrf.mxu0
    %v1979 = vadd.f32 0.0, %v1978
    %v1980 = vpop.f32.mrf.mxu0
    %v1981 = vadd.f32 0.0, %v1980
    %1982 = vmatprep.mubr.f32.mxu0 0.0
    %1983 = vmatmul.mubr.f32.gmra.mxu0 %v1579
    %v1984 = vpop.f32.mrf.mxu0
    %v1985 = vadd.f32 0.0, %v1984
    %v1986 = vpop.f32.mrf.mxu0
    %v1987 = vadd.f32 0.0, %v1986
    %1988 = vmatprep.mubr.f32.mxu0 0.0
    %1989 = vmatmul.mubr.f32.gmra.mxu0 %v1582
    %v1990 = vpop.f32.mrf.mxu0
    %v1991 = vadd.f32 0.0, %v1990
    %v1992 = vpop.f32.mrf.mxu0
    %v1993 = vadd.f32 0.0, %v1992
    %1994 = vdwg.mxu0
    %1995 = vmatprep.subr.mxu0 0.0
    %1996 = vmatpush1.msra.mxu0 0.0
    %1997 = vmatprep.subr.mxu0 0.0
    %1998 = vmatpush1.msra.mxu0 0.0
    %1999 = vmatprep.subr.mxu0 0.0
    %2000 = vmatpush1.msra.mxu0 0.0
    %2001 = vmatprep.subr.mxu0 0.0
    %2002 = vmatpush1.msra.mxu0 0.0
    %2003 = vmatprep.subr.mxu0 0.0
    %2004 = vmatpush1.msra.mxu0 0.0
    %2005 = vmatprep.subr.mxu0 0.0
    %2006 = vmatpush1.msra.mxu0 0.0
    %2007 = vmatprep.subr.mxu0 0.0
    %2008 = vmatpush1.msra.mxu0 0.0
    %2009 = vmatprep.subr.mxu0 0.0
    %2010 = vmatpush1.msra.mxu0 0.0
    %2011 = vmatprep.subr.mxu0 0.0
    %2012 = vmatpush1.msra.mxu0 0.0
    %2013 = vmatprep.subr.mxu0 0.0
    %2014 = vmatpush1.msra.mxu0 0.0
    %2015 = vmatprep.subr.mxu0 0.0
    %2016 = vmatpush1.msra.mxu0 0.0
    %2017 = vmatprep.subr.mxu0 0.0
    %2018 = vmatpush1.msra.mxu0 0.0
    %2019 = vmatprep.subr.mxu0 0.0
    %2020 = vmatpush1.msra.mxu0 0.0
    %2021 = vmatprep.subr.mxu0 0.0
    %2022 = vmatpush1.msra.mxu0 0.0
    %2023 = vmatprep.subr.mxu0 0.0
    %2024 = vmatpush1.msra.mxu0 %v1546
    %2025 = vmatprep.subr.mxu0 0.0
    %2026 = vmatpush1.msra.mxu0 %v1539
    %2027 = vmatprep.subr.mxu0 0.0
    %2028 = vmatpush2.msra.mxu0 0.0
    %2029 = vmatprep.subr.mxu0 0.0
    %2030 = vmatpush2.msra.mxu0 0.0
    %2031 = vmatprep.subr.mxu0 0.0
    %2032 = vmatpush2.msra.mxu0 0.0
    %2033 = vmatprep.subr.mxu0 0.0
    %2034 = vmatpush2.msra.mxu0 0.0
    %2035 = vmatprep.subr.mxu0 0.0
    %2036 = vmatpush2.msra.mxu0 0.0
    %2037 = vmatprep.subr.mxu0 0.0
    %2038 = vmatpush2.msra.mxu0 0.0
    %2039 = vmatprep.subr.mxu0 0.0
    %2040 = vmatpush2.msra.mxu0 0.0
    %2041 = vmatprep.subr.mxu0 0.0
    %2042 = vmatpush2.msra.mxu0 0.0
    %2043 = vmatprep.subr.mxu0 0.0
    %2044 = vmatpush2.msra.mxu0 0.0
    %2045 = vmatprep.subr.mxu0 0.0
    %2046 = vmatpush2.msra.mxu0 0.0
    %2047 = vmatprep.subr.mxu0 0.0
    %2048 = vmatpush2.msra.mxu0 0.0
    %2049 = vmatprep.subr.mxu0 0.0
    %2050 = vmatpush2.msra.mxu0 0.0
    %2051 = vmatprep.subr.mxu0 0.0
    %2052 = vmatpush2.msra.mxu0 0.0
    %2053 = vmatprep.subr.mxu0 0.0
    %2054 = vmatpush2.msra.mxu0 0.0
    %2055 = vmatprep.subr.mxu0 0.0
    %2056 = vmatpush2.msra.mxu0 0.0
    %2057 = vmatprep.subr.mxu0 0.0
    %2058 = vmatpush2.msra.mxu0 0.0
    %2059 = vmatprep.mubr.f32.mxu0 0.0
    %2060 = vmatmul.mubr.f32.gmra.mxu0 %v1549
    %v2061 = vpop.f32.mrf.mxu0
    %v2062 = vadd.f32 0.0, %v2061
    %v2063 = vpop.f32.mrf.mxu0
    %2064 = vmatprep.mubr.f32.mxu0 0.0
    %2065 = vmatmul.mubr.f32.gmra.mxu0 %v1552
    %v2066 = vpop.f32.mrf.mxu0
    %v2067 = vadd.f32 0.0, %v2066
    %v2068 = vpop.f32.mrf.mxu0
    %2069 = vmatprep.mubr.f32.mxu0 0.0
    %2070 = vmatmul.mubr.f32.gmra.mxu0 %v1555
    %v2071 = vpop.f32.mrf.mxu0
    %v2072 = vadd.f32 0.0, %v2071
    %v2073 = vpop.f32.mrf.mxu0
    %2074 = vmatprep.mubr.f32.mxu0 0.0
    %2075 = vmatmul.mubr.f32.gmra.mxu0 %v1558
    %v2076 = vpop.f32.mrf.mxu0
    %v2077 = vadd.f32 0.0, %v2076
    %v2078 = vpop.f32.mrf.mxu0
    %2079 = vmatprep.mubr.f32.mxu0 0.0
    %2080 = vmatmul.mubr.f32.gmra.mxu0 %v1561
    %v2081 = vpop.f32.mrf.mxu0
    %v2082 = vadd.f32 0.0, %v2081
    %v2083 = vpop.f32.mrf.mxu0
    %2084 = vmatprep.mubr.f32.mxu0 0.0
    %2085 = vmatmul.mubr.f32.gmra.mxu0 %v1564
    %v2086 = vpop.f32.mrf.mxu0
    %v2087 = vadd.f32 0.0, %v2086
    %v2088 = vpop.f32.mrf.mxu0
    %2089 = vmatprep.mubr.f32.mxu0 0.0
    %2090 = vmatmul.mubr.f32.gmra.mxu0 %v1567
    %v2091 = vpop.f32.mrf.mxu0
    %v2092 = vadd.f32 0.0, %v2091
    %v2093 = vpop.f32.mrf.mxu0
    %2094 = vmatprep.mubr.f32.mxu0 0.0
    %2095 = vmatmul.mubr.f32.gmra.mxu0 %v1570
    %v2096 = vpop.f32.mrf.mxu0
    %v2097 = vadd.f32 0.0, %v2096
    %v2098 = vpop.f32.mrf.mxu0
    %2099 = vmatprep.mubr.f32.mxu0 0.0
    %2100 = vmatmul.mubr.f32.gmra.mxu0 %v1573
    %v2101 = vpop.f32.mrf.mxu0
    %v2102 = vadd.f32 0.0, %v2101
    %v2103 = vpop.f32.mrf.mxu0
    %2104 = vmatprep.mubr.f32.mxu0 0.0
    %2105 = vmatmul.mubr.f32.gmra.mxu0 %v1576
    %v2106 = vpop.f32.mrf.mxu0
    %v2107 = vadd.f32 0.0, %v2106
    %v2108 = vpop.f32.mrf.mxu0
    %2109 = vmatprep.mubr.f32.mxu0 0.0
    %2110 = vmatmul.mubr.f32.gmra.mxu0 %v1579
    %v2111 = vpop.f32.mrf.mxu0
    %v2112 = vadd.f32 0.0, %v2111
    %v2113 = vpop.f32.mrf.mxu0
    %2114 = vmatprep.mubr.f32.mxu0 0.0
    %2115 = vmatmul.mubr.f32.gmra.mxu0 %v1582
    %v2116 = vpop.f32.mrf.mxu0
    %v2117 = vadd.f32 0.0, %v2116
    %v2118 = vpop.f32.mrf.mxu0
    %2119 = vdwg.mxu0
    %v2120 = vld [vmem:[#allocation5] sm:$0xff]
    %v2121 = vld [vmem:[#allocation5 + $0x8] sm:$0xff]
    %v2122 = vld [vmem:[#allocation5 + $0x10] sm:$0xff]
    %v2123 = vld [vmem:[#allocation5 + $0x18] sm:$0xff]
    %v2124 = vld [vmem:[#allocation5 + $0x20] sm:$0xff]
    %v2125 = vld [vmem:[#allocation5 + $0x28] sm:$0xff]
    %v2126 = vld [vmem:[#allocation5 + $0x30] sm:$0xff]
    %v2127 = vld [vmem:[#allocation5 + $0x38] sm:$0xff]
    %v2128 = vld [vmem:[#allocation5 + $0x40] sm:$0xff]
    %v2129 = vld [vmem:[#allocation5 + $0x48] sm:$0xff]
    %v2130 = vld [vmem:[#allocation5 + $0x50] sm:$0xff]
    %v2131 = vld [vmem:[#allocation5 + $0x58] sm:$0xff]
    %v2132 = vld [vmem:[#allocation5 + $0x60] sm:$0xff]
    %v2133 = vld [vmem:[#allocation5 + $0x68] sm:$0xff]
    %v2134 = vld [vmem:[#allocation5 + $0x70] sm:$0xff]
    %v2135 = vld [vmem:[#allocation5 + $0x78] sm:$0xff]
    %v2136 = vld [vmem:[#allocation5 + $0x80] sm:$0xff]
    %v2137 = vld [vmem:[#allocation5 + $0x88] sm:$0xff]
    %v2138 = vld [vmem:[#allocation5 + $0x90] sm:$0xff]
    %v2139 = vld [vmem:[#allocation5 + $0x98] sm:$0xff]
    %v2140 = vld [vmem:[#allocation5 + $0xa0] sm:$0xff]
    %v2141 = vld [vmem:[#allocation5 + $0xa8] sm:$0xff]
    %v2142 = vld [vmem:[#allocation5 + $0xb0] sm:$0xff]
    %v2143 = vld [vmem:[#allocation5 + $0xb8] sm:$0xff]
    %v2144 = vld [vmem:[#allocation5 + $0xc0] sm:$0xff]
    %v2145 = vld [vmem:[#allocation5 + $0xc8] sm:$0xff]
    %v2146 = vld [vmem:[#allocation5 + $0xd0] sm:$0xff]
    %v2147 = vld [vmem:[#allocation5 + $0xd8] sm:$0xff]
    %v2148 = vld [vmem:[#allocation5 + $0xe0] sm:$0xff]
    %v2149 = vld [vmem:[#allocation5 + $0xe8] sm:$0xff]
    %v2150 = vld [vmem:[#allocation5 + $0xf0] sm:$0xff]
    %v2151 = vld [vmem:[#allocation5 + $0xf8] sm:$0xff]
    %v2152 = vld [vmem:[#allocation5 + $0x100] sm:$0xff]
    %v2153 = vld [vmem:[#allocation5 + $0x108] sm:$0xff]
    %v2154 = vld [vmem:[#allocation5 + $0x110] sm:$0xff]
    %v2155 = vld [vmem:[#allocation5 + $0x118] sm:$0xff]
    %v2156 = vld [vmem:[#allocation5 + $0x120] sm:$0xff]
    %v2157 = vld [vmem:[#allocation5 + $0x128] sm:$0xff]
    %v2158 = vld [vmem:[#allocation5 + $0x130] sm:$0xff]
    %v2159 = vld [vmem:[#allocation5 + $0x138] sm:$0xff]
    %v2160 = vld [vmem:[#allocation5 + $0x140] sm:$0xff]
    %v2161 = vld [vmem:[#allocation5 + $0x148] sm:$0xff]
    %v2162 = vld [vmem:[#allocation5 + $0x150] sm:$0xff]
    %v2163 = vld [vmem:[#allocation5 + $0x158] sm:$0xff]
    %v2164 = vld [vmem:[#allocation5 + $0x160] sm:$0xff]
    %v2165 = vld [vmem:[#allocation5 + $0x168] sm:$0xff]
    %v2166 = vld [vmem:[#allocation5 + $0x170] sm:$0xff]
    %v2167 = vld [vmem:[#allocation5 + $0x178] sm:$0xff]
    %v2168 = vld [vmem:[#allocation5 + $0x180] sm:$0xff]
    %v2169 = vld [vmem:[#allocation5 + $0x188] sm:$0xff]
    %v2170 = vld [vmem:[#allocation5 + $0x190] sm:$0xff]
    %v2171 = vld [vmem:[#allocation5 + $0x198] sm:$0xff]
    %v2172 = vld [vmem:[#allocation5 + $0x1a0] sm:$0xff]
    %v2173 = vld [vmem:[#allocation5 + $0x1a8] sm:$0xff]
    %v2174 = vld [vmem:[#allocation5 + $0x1b0] sm:$0xff]
    %v2175 = vld [vmem:[#allocation5 + $0x1b8] sm:$0xff]
    %v2176 = vld [vmem:[#allocation5 + $0x1c0] sm:$0xff]
    %v2177 = vld [vmem:[#allocation5 + $0x1c8] sm:$0xff]
    %v2178 = vld [vmem:[#allocation5 + $0x1d0] sm:$0xff]
    %v2179 = vld [vmem:[#allocation5 + $0x1d8] sm:$0xff]
    %v2180 = vld [vmem:[#allocation5 + $0x1e0] sm:$0xff]
    %v2181 = vld [vmem:[#allocation5 + $0x1e8] sm:$0xff]
    %v2182 = vld [vmem:[#allocation5 + $0x1f0] sm:$0xff]
    %v2183 = vld [vmem:[#allocation5 + $0x1f8] sm:$0xff]
    %v2184 = vld [vmem:[#allocation5 + $0x200] sm:$0xff]
    %v2185 = vld [vmem:[#allocation5 + $0x208] sm:$0xff]
    %v2186 = vld [vmem:[#allocation5 + $0x210] sm:$0xff]
    %v2187 = vld [vmem:[#allocation5 + $0x218] sm:$0xff]
    %v2188 = vld [vmem:[#allocation5 + $0x220] sm:$0xff]
    %v2189 = vld [vmem:[#allocation5 + $0x228] sm:$0xff]
    %v2190 = vld [vmem:[#allocation5 + $0x230] sm:$0xff]
    %v2191 = vld [vmem:[#allocation5 + $0x238] sm:$0xff]
    %v2192 = vld [vmem:[#allocation5 + $0x240] sm:$0xff]
    %v2193 = vld [vmem:[#allocation5 + $0x248] sm:$0xff]
    %v2194 = vld [vmem:[#allocation5 + $0x250] sm:$0xff]
    %v2195 = vld [vmem:[#allocation5 + $0x258] sm:$0xff]
    %v2196 = vld [vmem:[#allocation5 + $0x260] sm:$0xff]
    %v2197 = vld [vmem:[#allocation5 + $0x268] sm:$0xff]
    %v2198 = vld [vmem:[#allocation5 + $0x270] sm:$0xff]
    %v2199 = vld [vmem:[#allocation5 + $0x278] sm:$0xff]
    %v2200 = vld [vmem:[#allocation5 + $0x280] sm:$0xff]
    %v2201 = vld [vmem:[#allocation5 + $0x288] sm:$0xff]
    %v2202 = vld [vmem:[#allocation5 + $0x290] sm:$0xff]
    %v2203 = vld [vmem:[#allocation5 + $0x298] sm:$0xff]
    %v2204 = vmul.f32 %v2120, %v1651
    %v2205 = vmul.f32 %v2121, %v1653
    %v2206 = vmul.f32 %v2122, %v1788
    %v2207 = vmul.f32 %v2123, %v1790
    %v2208 = vmul.f32 %v2124, %v1925
    %v2209 = vmul.f32 %v2125, %v1927
    %v2210 = vmul.f32 %v2126, %v2062
    %v2211 = vmul.f32 %v2127, %v1657
    %v2212 = vmul.f32 %v2128, %v1659
    %v2213 = vmul.f32 %v2129, %v1794
    %v2214 = vmul.f32 %v2130, %v1796
    %v2215 = vmul.f32 %v2131, %v1931
    %v2216 = vmul.f32 %v2132, %v1933
    %v2217 = vmul.f32 %v2133, %v2067
    %v2218 = vmul.f32 %v2134, %v1663
    %v2219 = vmul.f32 %v2135, %v1665
    %v2220 = vmul.f32 %v2136, %v1800
    %v2221 = vmul.f32 %v2137, %v1802
    %v2222 = vmul.f32 %v2138, %v1937
    %v2223 = vmul.f32 %v2139, %v1939
    %v2224 = vmul.f32 %v2140, %v2072
    %v2225 = vmul.f32 %v2141, %v1669
    %v2226 = vmul.f32 %v2142, %v1671
    %v2227 = vmul.f32 %v2143, %v1806
    %v2228 = vmul.f32 %v2144, %v1808
    %v2229 = vmul.f32 %v2145, %v1943
    %v2230 = vmul.f32 %v2146, %v1945
    %v2231 = vmul.f32 %v2147, %v2077
    %v2232 = vmul.f32 %v2148, %v1675
    %v2233 = vmul.f32 %v2149, %v1677
    %v2234 = vmul.f32 %v2150, %v1812
    %v2235 = vmul.f32 %v2151, %v1814
    %v2236 = vmul.f32 %v2152, %v1949
    %v2237 = vmul.f32 %v2153, %v1951
    %v2238 = vmul.f32 %v2154, %v2082
    %v2239 = vmul.f32 %v2155, %v1681
    %v2240 = vmul.f32 %v2156, %v1683
    %v2241 = vmul.f32 %v2157, %v1818
    %v2242 = vmul.f32 %v2158, %v1820
    %v2243 = vmul.f32 %v2159, %v1955
    %v2244 = vmul.f32 %v2160, %v1957
    %v2245 = vmul.f32 %v2161, %v2087
    %v2246 = vmul.f32 %v2162, %v1687
    %v2247 = vmul.f32 %v2163, %v1689
    %v2248 = vmul.f32 %v2164, %v1824
    %v2249 = vmul.f32 %v2165, %v1826
    %v2250 = vmul.f32 %v2166, %v1961
    %v2251 = vmul.f32 %v2167, %v1963
    %v2252 = vmul.f32 %v2168, %v2092
    %v2253 = vmul.f32 %v2169, %v1693
    %v2254 = vmul.f32 %v2170, %v1695
    %v2255 = vmul.f32 %v2171, %v1830
    %v2256 = vmul.f32 %v2172, %v1832
    %v2257 = vmul.f32 %v2173, %v1967
    %v2258 = vmul.f32 %v2174, %v1969
    %v2259 = vmul.f32 %v2175, %v2097
    %v2260 = vmul.f32 %v2176, %v1699
    %v2261 = vmul.f32 %v2177, %v1701
    %v2262 = vmul.f32 %v2178, %v1836
    %v2263 = vmul.f32 %v2179, %v1838
    %v2264 = vmul.f32 %v2180, %v1973
    %v2265 = vmul.f32 %v2181, %v1975
    %v2266 = vmul.f32 %v2182, %v2102
    %v2267 = vmul.f32 %v2183, %v1705
    %v2268 = vmul.f32 %v2184, %v1707
    %v2269 = vmul.f32 %v2185, %v1842
    %v2270 = vmul.f32 %v2186, %v1844
    %v2271 = vmul.f32 %v2187, %v1979
    %v2272 = vmul.f32 %v2188, %v1981
    %v2273 = vmul.f32 %v2189, %v2107
    %v2274 = vmul.f32 %v2190, %v1711
    %v2275 = vmul.f32 %v2191, %v1713
    %v2276 = vmul.f32 %v2192, %v1848
    %v2277 = vmul.f32 %v2193, %v1850
    %v2278 = vmul.f32 %v2194, %v1985
    %v2279 = vmul.f32 %v2195, %v1987
    %v2280 = vmul.f32 %v2196, %v2112
    %v2281 = vmul.f32 %v2197, %v1717
    %v2282 = vmul.f32 %v2198, %v1719
    %v2283 = vmul.f32 %v2199, %v1854
    %v2284 = vmul.f32 %v2200, %v1856
    %v2285 = vmul.f32 %v2201, %v1991
    %v2286 = vmul.f32 %v2202, %v1993
    %v2287 = vmul.f32 %v2203, %v2117
    %2288 = vst [vmem:[#allocation7] sm:$0xff] %v2204
    %2289 = vst [vmem:[#allocation7 + $0x8] sm:$0xff] %v2205
    %2290 = vst [vmem:[#allocation7 + $0x10] sm:$0xff] %v2206
    %2291 = vst [vmem:[#allocation7 + $0x18] sm:$0xff] %v2207
    %2292 = vst [vmem:[#allocation7 + $0x20] sm:$0xff] %v2208
    %2293 = vst [vmem:[#allocation7 + $0x28] sm:$0xff] %v2209
    %2294 = vst.msk [vmem:[#allocation7 + $0x30] sm:$0xff] %vm1547, %v2210
    %2295 = vst [vmem:[#allocation7 + $0x38] sm:$0xff] %v2211
    %2296 = vst [vmem:[#allocation7 + $0x40] sm:$0xff] %v2212
    %2297 = vst [vmem:[#allocation7 + $0x48] sm:$0xff] %v2213
    %2298 = vst [vmem:[#allocation7 + $0x50] sm:$0xff] %v2214
    %2299 = vst [vmem:[#allocation7 + $0x58] sm:$0xff] %v2215
    %2300 = vst [vmem:[#allocation7 + $0x60] sm:$0xff] %v2216
    %2301 = vst.msk [vmem:[#allocation7 + $0x68] sm:$0xff] %vm1547, %v2217
    %2302 = vst [vmem:[#allocation7 + $0x70] sm:$0xff] %v2218
    %2303 = vst [vmem:[#allocation7 + $0x78] sm:$0xff] %v2219
    %2304 = vst [vmem:[#allocation7 + $0x80] sm:$0xff] %v2220
    %2305 = vst [vmem:[#allocation7 + $0x88] sm:$0xff] %v2221
    %2306 = vst [vmem:[#allocation7 + $0x90] sm:$0xff] %v2222
    %2307 = vst [vmem:[#allocation7 + $0x98] sm:$0xff] %v2223
    %2308 = vst.msk [vmem:[#allocation7 + $0xa0] sm:$0xff] %vm1547, %v2224
    %2309 = vst [vmem:[#allocation7 + $0xa8] sm:$0xff] %v2225
    %2310 = vst [vmem:[#allocation7 + $0xb0] sm:$0xff] %v2226
    %2311 = vst [vmem:[#allocation7 + $0xb8] sm:$0xff] %v2227
    %2312 = vst [vmem:[#allocation7 + $0xc0] sm:$0xff] %v2228
    %2313 = vst [vmem:[#allocation7 + $0xc8] sm:$0xff] %v2229
    %2314 = vst [vmem:[#allocation7 + $0xd0] sm:$0xff] %v2230
    %2315 = vst.msk [vmem:[#allocation7 + $0xd8] sm:$0xff] %vm1547, %v2231
    %2316 = vst [vmem:[#allocation7 + $0xe0] sm:$0xff] %v2232
    %2317 = vst [vmem:[#allocation7 + $0xe8] sm:$0xff] %v2233
    %2318 = vst [vmem:[#allocation7 + $0xf0] sm:$0xff] %v2234
    %2319 = vst [vmem:[#allocation7 + $0xf8] sm:$0xff] %v2235
    %2320 = vst [vmem:[#allocation7 + $0x100] sm:$0xff] %v2236
    %2321 = vst [vmem:[#allocation7 + $0x108] sm:$0xff] %v2237
    %2322 = vst.msk [vmem:[#allocation7 + $0x110] sm:$0xff] %vm1547, %v2238
    %2323 = vst [vmem:[#allocation7 + $0x118] sm:$0xff] %v2239
    %2324 = vst [vmem:[#allocation7 + $0x120] sm:$0xff] %v2240
    %2325 = vst [vmem:[#allocation7 + $0x128] sm:$0xff] %v2241
    %2326 = vst [vmem:[#allocation7 + $0x130] sm:$0xff] %v2242
    %2327 = vst [vmem:[#allocation7 + $0x138] sm:$0xff] %v2243
    %2328 = vst [vmem:[#allocation7 + $0x140] sm:$0xff] %v2244
    %2329 = vst.msk [vmem:[#allocation7 + $0x148] sm:$0xff] %vm1547, %v2245
    %2330 = vst [vmem:[#allocation7 + $0x150] sm:$0xff] %v2246
    %2331 = vst [vmem:[#allocation7 + $0x158] sm:$0xff] %v2247
    %2332 = vst [vmem:[#allocation7 + $0x160] sm:$0xff] %v2248
    %2333 = vst [vmem:[#allocation7 + $0x168] sm:$0xff] %v2249
    %2334 = vst [vmem:[#allocation7 + $0x170] sm:$0xff] %v2250
    %2335 = vst [vmem:[#allocation7 + $0x178] sm:$0xff] %v2251
    %2336 = vst.msk [vmem:[#allocation7 + $0x180] sm:$0xff] %vm1547, %v2252
    %2337 = vst [vmem:[#allocation7 + $0x188] sm:$0xff] %v2253
    %2338 = vst [vmem:[#allocation7 + $0x190] sm:$0xff] %v2254
    %2339 = vst [vmem:[#allocation7 + $0x198] sm:$0xff] %v2255
    %2340 = vst [vmem:[#allocation7 + $0x1a0] sm:$0xff] %v2256
    %2341 = vst [vmem:[#allocation7 + $0x1a8] sm:$0xff] %v2257
    %2342 = vst [vmem:[#allocation7 + $0x1b0] sm:$0xff] %v2258
    %2343 = vst.msk [vmem:[#allocation7 + $0x1b8] sm:$0xff] %vm1547, %v2259
    %2344 = vst [vmem:[#allocation7 + $0x1c0] sm:$0xff] %v2260
    %2345 = vst [vmem:[#allocation7 + $0x1c8] sm:$0xff] %v2261
    %2346 = vst [vmem:[#allocation7 + $0x1d0] sm:$0xff] %v2262
    %2347 = vst [vmem:[#allocation7 + $0x1d8] sm:$0xff] %v2263
    %2348 = vst [vmem:[#allocation7 + $0x1e0] sm:$0xff] %v2264
    %2349 = vst [vmem:[#allocation7 + $0x1e8] sm:$0xff] %v2265
    %2350 = vst.msk [vmem:[#allocation7 + $0x1f0] sm:$0xff] %vm1547, %v2266
    %2351 = vst [vmem:[#allocation7 + $0x1f8] sm:$0xff] %v2267
    %2352 = vst [vmem:[#allocation7 + $0x200] sm:$0xff] %v2268
    %2353 = vst [vmem:[#allocation7 + $0x208] sm:$0xff] %v2269
    %2354 = vst [vmem:[#allocation7 + $0x210] sm:$0xff] %v2270
    %2355 = vst [vmem:[#allocation7 + $0x218] sm:$0xff] %v2271
    %2356 = vst [vmem:[#allocation7 + $0x220] sm:$0xff] %v2272
    %2357 = vst.msk [vmem:[#allocation7 + $0x228] sm:$0xff] %vm1547, %v2273
    %2358 = vst [vmem:[#allocation7 + $0x230] sm:$0xff] %v2274
    %2359 = vst [vmem:[#allocation7 + $0x238] sm:$0xff] %v2275
    %2360 = vst [vmem:[#allocation7 + $0x240] sm:$0xff] %v2276
    %2361 = vst [vmem:[#allocation7 + $0x248] sm:$0xff] %v2277
    %2362 = vst [vmem:[#allocation7 + $0x250] sm:$0xff] %v2278
    %2363 = vst [vmem:[#allocation7 + $0x258] sm:$0xff] %v2279
    %2364 = vst.msk [vmem:[#allocation7 + $0x260] sm:$0xff] %vm1547, %v2280
    %2365 = vst [vmem:[#allocation7 + $0x268] sm:$0xff] %v2281
    %2366 = vst [vmem:[#allocation7 + $0x270] sm:$0xff] %v2282
    %2367 = vst [vmem:[#allocation7 + $0x278] sm:$0xff] %v2283
    %2368 = vst [vmem:[#allocation7 + $0x280] sm:$0xff] %v2284
    %2369 = vst [vmem:[#allocation7 + $0x288] sm:$0xff] %v2285
    %2370 = vst [vmem:[#allocation7 + $0x290] sm:$0xff] %v2286
    %2371 = vst.msk [vmem:[#allocation7 + $0x298] sm:$0xff] %vm1547, %v2287
    // Predicated region
    $region26: #{tpu_custom_call.1} parent=1 // pred_check
      _
    $region27: #{tpu_custom_call.1} parent=1 // pred_check_branch
      %2373 = sbr.rel (0) target = $region29
    $region28: #{tpu_custom_call.1} parent=1 // pred_region
      %s2375 = ssub.s32 10752, 10752
      %2376 = vsyncadd [#allocation4], %s2375
      %s2377 = sshll.u32 [#allocation7], 4
      %s2378 = int_to_ptr.vmem [resolvable:$true] %s2377
      %2383 = dma.vmem_to_hbm [thread:$0]  %s2378, 10752, %s4, [#allocation4], 896, 896, 56
    $region29: #{tpu_custom_call.1} parent=1 // pred_fallthru
      _
    // Predicated region
    $region30: #{tpu_custom_call.1} parent=1 // pred_check
      _
    $region31: #{tpu_custom_call.1} parent=1 // pred_check_branch
      %2385 = sbr.rel (0) target = $region33
    $region32: #{tpu_custom_call.1} parent=1 // pred_region
      %2386 = dma.done [#allocation4], 10752
    $region33: #{tpu_custom_call.1} parent=1 // pred_fallthru
      _
    %2387 = vsyncpa [#allocation3], 1
    %2388 = vsyncpa [#allocation6], 1
    %2389 = vsyncpa [#allocation4], 1

</llo_original>
